<compile_context>
chip_gen: v7x
topology: tpu7x:2x2x1
jax: 0.10.0
libtpu: 0.0.40
codegen_flags: <defaults>
</compile_context>

<pallas_src>
import functools

import numpy as np

import jax
import jax.numpy as jnp
from jax import lax
from jax.experimental import pallas as pl
from jax.experimental.pallas import tpu as pltpu


# ----------------------------------------------------------------------------
# Fully fused kernel: ResnetBlock + LocalMSA for one image.
# All activations are channel-major (C, P) with P = (H+2)*(W+2) on the lanes.
# ----------------------------------------------------------------------------
def _make_fused_kernel(H, W, Cin, Cout, heads, dim_head):
    Wp = W + 2
    P = (H + 2) * (W + 2)
    dh = dim_head
    # flat-lane offset of conv tap (dy, dx) relative to the output position.
    taps = [(dy - 1) * Wp + (dx - 1) for dy in range(3) for dx in range(3)]

    def kernel(xp_ref, widr_ref, widc_ref, w1_ref, b1_ref, w2_ref, b2_ref,
               wqkv_ref, bqkv_ref, bo_ref, o_ref):
        f32, bf16 = jnp.float32, jnp.bfloat16
        xp = xp_ref[...].astype(f32)                     # (Cin, P) padded image

        wid_r = widr_ref[...]                            # (1, P)  window id / -1
        wid_c = widc_ref[...]                            # (P, 1)
        valid = wid_r >= 0                               # (1, P)  interior pixels
        # block-diagonal (per-window) additive mask; symmetric by construction.
        attn_mask = jnp.where(wid_c == wid_r, 0.0, -1e9)  # (P, P)

        def lane_shift(act, off):
            # result[:, q] = act[:, q + off]  (lane-axis data movement only).
            return act if off == 0 else jnp.roll(act, -off, axis=1)

        def im2col(act, extra=None):
            cols = [lane_shift(act, off) for off in taps]
            if extra is not None:
                cols.append(extra)                       # identity 1x1 "10th tap"
            return jnp.concatenate(cols, axis=0).astype(bf16)

        # conv1 * BN1-scale (folded) + bias + ReLU; re-zero the padding ring so
        # the same (Cout, P) slab is directly the zero-padded input of conv2.
        z1 = jnp.dot(w1_ref[...], im2col(xp), preferred_element_type=f32)
        z1 = jnp.where(valid, jnp.maximum(z1 + b1_ref[...], 0.0), 0.0)

        # conv2 * BN2-scale + identity(1x1 conv * BN_id-scale) + bias + ReLU,
        # as one K=152 dot (identity folded in as the last Cin rows of im2col).
        z2 = jnp.dot(w2_ref[...], im2col(z1, extra=xp), preferred_element_type=f32)
        z2 = jnp.maximum(z2 + b2_ref[...], 0.0)          # (Cout, P)

        # Folded LocalMSA projection: rows = [q(all heads) | k(all heads) | v@Wo].
        qkv = jnp.dot(wqkv_ref[...], z2.astype(bf16), preferred_element_type=f32)
        qkv = qkv + bqkv_ref[...]                        # (Dqkv, P)

        k_off, v_off = heads * dh, 2 * heads * dh
        acc = jnp.zeros((Cout, P), f32)
        # heads == 2: per-head slices are sublane-aligned in this layout; the
        # tiny Python loop costs two MXU pushes per dot.
        for h in range(heads):
            qh = qkv[h * dh:(h + 1) * dh, :].astype(bf16)                 # (dh, P)
            kh = qkv[k_off + h * dh:k_off + (h + 1) * dh, :].astype(bf16)
            voh = qkv[v_off + h * Cout:v_off + (h + 1) * Cout, :].astype(bf16)
            # logits stored (key, query) so the PV matmul lands channel-major.
            s = lax.dot_general(kh, qh, (((0,), (0,)), ((), ())),
                                preferred_element_type=f32)               # (P, P)
            s = s + attn_mask
            m = jnp.max(s, axis=0, keepdims=True)
            p = jnp.exp(s - m)
            denom = jnp.sum(p, axis=0, keepdims=True)
            attn = (p * pl.reciprocal(denom, approx=True)).astype(bf16)
            acc = acc + jnp.dot(voh, attn, preferred_element_type=f32)    # (Cout, P)

        out = acc + bo_ref[...] + z2                     # attention + bias + residual
        o_ref[...] = out.astype(o_ref.dtype)             # lane-dense bf16 store

    return kernel


def _window_ids(H, W, ws):
    """Static window id per padded flat position; -1 for padding / garbage."""
    Hp, Wp = H + 2, W + 2
    idx = np.arange(Hp * Wp)
    r, c = idx // Wp, idx % Wp
    valid = (r >= 1) & (r <= H) & (c >= 1) & (c <= W)
    wid = np.where(valid, ((r - 1) // ws) * (W // ws) + (c - 1) // ws, -1)
    return wid.astype(np.int32)


# ----------------------------------------------------------------------------
# Parameter init (PyTorch-equivalent shapes) and BN folding.
# ----------------------------------------------------------------------------
def _folded_bn(key, c, eps=1e-5):
    k1, k2, k3, k4 = jax.random.split(key, 4)
    gamma = 1.0 + 0.1 * jax.random.normal(k1, (c,), jnp.float32)
    beta = 0.1 * jax.random.normal(k2, (c,), jnp.float32)
    rmean = 0.1 * jax.random.normal(k3, (c,), jnp.float32)
    rvar = 1.0 + 0.1 * jnp.abs(jax.random.normal(k4, (c,), jnp.float32))
    scale = gamma / jnp.sqrt(rvar + eps)
    bias = beta - rmean * scale
    return scale, bias


def init_params(key, cin, cout, heads, dim_head):
    inner = cout // 2  # LocalMSA: inner_dim = in_channels // 2
    ks = jax.random.split(key, 14)
    nrm = lambda k, shape: 0.05 * jax.random.normal(k, shape, jnp.float32)
    return dict(
        w_conv1=nrm(ks[0], (9, cin, cout)),          # ResnetBlock conv1 (3x3, no bias)
        bn1=_folded_bn(ks[1], cout),
        w_conv2=nrm(ks[2], (9, cout, cout)),         # ResnetBlock conv2 (3x3, no bias)
        bn2=_folded_bn(ks[3], cout),
        w_id=nrm(ks[4], (cin, cout)),                # identity 1x1 conv (no bias)
        bn_id=_folded_bn(ks[5], cout),
        w_msa_conv=nrm(ks[6], (cout, inner)),        # LocalMSA 1x1 conv
        b_msa_conv=nrm(ks[7], (inner,)),
        bn_msa=_folded_bn(ks[8], inner),
        wq=nrm(ks[9], (heads, inner, dim_head)),
        wk=nrm(ks[10], (heads, inner, dim_head)),
        wv=nrm(ks[11], (heads, inner, dim_head)),
        wo=nrm(ks[12], (heads, dim_head, cout)),
        bo=nrm(ks[13], (cout,)),
    )


# ----------------------------------------------------------------------------
# Forward pass: NCHW in, NCHW out (PyTorch-native); one pallas_call.
# ----------------------------------------------------------------------------
def res_msa_forward(x_nchw, params, heads, dim_head, window_size=7):
    B, Cin, H, W = x_nchw.shape
    Cout = params["w_conv1"].shape[-1]
    dh = dim_head
    bf16 = jnp.bfloat16
    Hp, Wp = H + 2, W + 2
    P = Hp * Wp

    s1, b1 = params["bn1"]
    s2, b2 = params["bn2"]
    sid, bid = params["bn_id"]
    sm, bm = params["bn_msa"]

    # BN scales folded into conv weights; only bias + ReLU remain in-kernel.
    w1f = (params["w_conv1"] * s1).reshape(9 * Cin, Cout).T          # (Cout, 72)
    w2f = (params["w_conv2"] * s2).reshape(9 * Cout, Cout)           # (144, Cout)
    widf = params["w_id"] * sid                                      # (Cin, Cout)
    w2id = jnp.concatenate([w2f, widf], axis=0).T                    # (Cout, 152)
    b2id = (b2 + bid).reshape(Cout, 1)

    # LocalMSA 1x1 conv + BN + q/k scale + (v @ w_out) folded into one projection.
    Wc_s = params["w_msa_conv"] * sm[None, :]
    bm_eff = bm + params["b_msa_conv"] * sm
    scale = float(dh) ** -0.5
    wq, wk, wv, wo = params["wq"], params["wk"], params["wv"], params["wo"]
    Wq_all = jnp.concatenate([wq[h] for h in range(heads)], axis=1)
    Wk_all = jnp.concatenate([wk[h] for h in range(heads)], axis=1)
    Wvo = jnp.concatenate([Wc_s @ (wv[h] @ wo[h]) for h in range(heads)], axis=1)
    bvo = jnp.concatenate([bm_eff @ (wv[h] @ wo[h]) for h in range(heads)], axis=0)
    Wqkv = jnp.concatenate([(Wc_s @ Wq_all) * scale, Wc_s @ Wk_all, Wvo], axis=1)
    bqkv = jnp.concatenate([(bm_eff @ Wq_all) * scale, bm_eff @ Wk_all, bvo], axis=0)
    Dqkv = Wqkv.shape[1]                                             # 2*h*dh + h*Cout

    # Padded, channel-major flat input (NCHW-native): (B, Cin, (H+2)*(W+2)).
    xp = jnp.pad(x_nchw, ((0, 0), (0, 0), (1, 1), (1, 1))).reshape(B, Cin, P)
    xp = xp.astype(bf16)

    wid = _window_ids(H, W, window_size)
    wid_row = jnp.asarray(wid).reshape(1, P)
    wid_col = jnp.asarray(wid).reshape(P, 1)

    kernel = _make_fused_kernel(H, W, Cin, Cout, heads, dh)
    out_flat = pl.pallas_call(
        kernel,
        out_shape=jax.ShapeDtypeStruct((B, Cout, P), bf16),
        grid=(B,),
        in_specs=[
            pl.BlockSpec((None, Cin, P), lambda b: (b, 0, 0)),
            pl.BlockSpec((1, P), lambda b: (0, 0)),
            pl.BlockSpec((P, 1), lambda b: (0, 0)),
            pl.BlockSpec((Cout, 9 * Cin), lambda b: (0, 0)),
            pl.BlockSpec((Cout, 1), lambda b: (0, 0)),
            pl.BlockSpec((Cout, 9 * Cout + Cin), lambda b: (0, 0)),
            pl.BlockSpec((Cout, 1), lambda b: (0, 0)),
            pl.BlockSpec((Dqkv, Cout), lambda b: (0, 0)),
            pl.BlockSpec((Dqkv, 1), lambda b: (0, 0)),
            pl.BlockSpec((Cout, 1), lambda b: (0, 0)),
        ],
        out_specs=pl.BlockSpec((None, Cout, P), lambda b: (b, 0, 0)),
        compiler_params=pltpu.CompilerParams(dimension_semantics=("parallel",)),
    )(xp, wid_row, wid_col,
      w1f.astype(bf16), b1.reshape(Cout, 1),
      w2id.astype(bf16), b2id,
      Wqkv.T.astype(bf16), bqkv.reshape(Dqkv, 1),
      params["bo"].reshape(Cout, 1))

    # Strip the padding ring; return PyTorch-style NCHW f32.
    out = out_flat.reshape(B, Cout, Hp, Wp)[:, :, 1:H + 1, 1:W + 1]
    return out.astype(jnp.float32)


# ----------------------------------------------------------------------------
# Plain-JAX f32 reference with the unfused math (sanity check).
# ----------------------------------------------------------------------------
def window_partition(x, ws):
    B, H, W, C = x.shape
    x = x.reshape(B, H // ws, ws, W // ws, ws, C).transpose(0, 1, 3, 2, 4, 5)
    return x.reshape(B * (H // ws) * (W // ws), ws * ws, C)


def window_unpartition(x, B, H, W, ws):
    C = x.shape[-1]
    x = x.reshape(B, H // ws, W // ws, ws, ws, C).transpose(0, 1, 3, 2, 4, 5)
    return x.reshape(B, H, W, C)


def im2col3x3(x):
    B, H, W, C = x.shape
    xp = jnp.pad(x, ((0, 0), (1, 1), (1, 1), (0, 0)))
    cols = [xp[:, dy:dy + H, dx:dx + W, :] for dy in range(3) for dx in range(3)]
    return jnp.concatenate(cols, axis=-1).reshape(B * H * W, 9 * C)


def reference_forward(x_nchw, params, heads, dim_head, window_size=7):
    x_nhwc = jnp.transpose(x_nchw, (0, 2, 3, 1))
    B, H, W, Cin = x_nhwc.shape
    Cout = params["w_conv1"].shape[-1]
    M = B * H * W
    s1, b1 = params["bn1"]
    w1 = params["w_conv1"].reshape(9 * Cin, Cout)
    z = jnp.maximum(im2col3x3(x_nhwc) @ w1 * s1 + b1, 0.0)
    sid, bid = params["bn_id"]
    ident = x_nhwc.reshape(M, Cin) @ params["w_id"] * sid + bid
    s2, b2 = params["bn2"]
    w2 = params["w_conv2"].reshape(9 * Cout, Cout)
    z2 = jnp.maximum(im2col3x3(z.reshape(B, H, W, Cout)) @ w2 * s2 + b2 + ident, 0.0)
    sm, bm = params["bn_msa"]
    a = z2 @ params["w_msa_conv"] * sm + (bm + params["b_msa_conv"] * sm)
    inner = a.shape[-1]
    a_win = window_partition(a.reshape(B, H, W, inner), window_size)
    z_win = window_partition(z2.reshape(B, H, W, Cout), window_size)
    scale = float(dim_head) ** -0.5
    q = jnp.einsum("wld,hde->whle", a_win, params["wq"]) * scale
    k = jnp.einsum("wld,hde->whle", a_win, params["wk"])
    v = jnp.einsum("wld,hde->whle", a_win, params["wv"])
    attn = jax.nn.softmax(jnp.einsum("whle,whme->whlm", q, k), axis=-1)
    o = jnp.einsum("whlm,whme->whle", attn, v)
    out = jnp.einsum("whle,heo->wlo", o, params["wo"]) + params["bo"] + z_win
    out_nhwc = window_unpartition(out, B, H, W, window_size)
    return jnp.transpose(out_nhwc, (0, 3, 1, 2))


if __name__ == "__main__":
    B, Cin, Cout = 2, 8, 16
    heads, dim_head = 2, 8
    H = W = 14                 # divisible by window_size=7
    window_size = 7

    key = jax.random.PRNGKey(0)
    kx, kp = jax.random.split(key)
    x = jax.random.normal(kx, (B, Cin, H, W), jnp.float32)   # PyTorch NCHW input
    params = init_params(kp, Cin, Cout, heads, dim_head)

    fwd = jax.jit(functools.partial(res_msa_forward, heads=heads,
                                    dim_head=dim_head, window_size=window_size))
    out = jax.block_until_ready(fwd(x, params))

    ref = reference_forward(x, params, heads, dim_head, window_size)
    assert out.shape == (B, Cout, H, W), out.shape
    max_err = float(jnp.max(jnp.abs(out - ref)))
    assert jnp.allclose(out, ref, rtol=5e-2, atol=2e-2), f"max abs err {max_err}"
    print("KERNEL_OK")
</pallas_src>

<mosaic_0001>
module attributes {stable_mosaic.version = 11 : i64} {
  func.func @kernel(%arg0: i32, %arg1: memref<1x8x256xbf16, #tpu.memory_space<vmem>>, %arg2: memref<1x256xi32, #tpu.memory_space<vmem>>, %arg3: memref<256x1xi32, #tpu.memory_space<vmem>>, %arg4: memref<16x72xbf16, #tpu.memory_space<vmem>>, %arg5: memref<16x1xf32, #tpu.memory_space<vmem>>, %arg6: memref<16x152xbf16, #tpu.memory_space<vmem>>, %arg7: memref<16x1xf32, #tpu.memory_space<vmem>>, %arg8: memref<64x16xbf16, #tpu.memory_space<vmem>>, %arg9: memref<64x1xf32, #tpu.memory_space<vmem>>, %arg10: memref<16x1xf32, #tpu.memory_space<vmem>>, %arg11: memref<1x16x256xbf16, #tpu.memory_space<vmem>>) attributes {dimension_semantics = [#tpu.dimension_semantics<parallel>], iteration_bounds = array<i64: 2>, scalar_prefetch = 0 : i64, scratch_operands = 0 : i64, tpu.core_type = #tpu.core_type<tc>, window_params = [{transform_indices = @transform_0, window_bounds = array<i64: 1, 8, 256>}, {pipeline_mode = #tpu.pipeline_mode<synchronous>, transform_indices = @transform_1, window_bounds = array<i64: 1, 256>}, {pipeline_mode = #tpu.pipeline_mode<synchronous>, transform_indices = @transform_2, window_bounds = array<i64: 256, 1>}, {pipeline_mode = #tpu.pipeline_mode<synchronous>, transform_indices = @transform_3, window_bounds = array<i64: 16, 72>}, {pipeline_mode = #tpu.pipeline_mode<synchronous>, transform_indices = @transform_4, window_bounds = array<i64: 16, 1>}, {pipeline_mode = #tpu.pipeline_mode<synchronous>, transform_indices = @transform_5, window_bounds = array<i64: 16, 152>}, {pipeline_mode = #tpu.pipeline_mode<synchronous>, transform_indices = @transform_6, window_bounds = array<i64: 16, 1>}, {pipeline_mode = #tpu.pipeline_mode<synchronous>, transform_indices = @transform_7, window_bounds = array<i64: 64, 16>}, {pipeline_mode = #tpu.pipeline_mode<synchronous>, transform_indices = @transform_8, window_bounds = array<i64: 64, 1>}, {pipeline_mode = #tpu.pipeline_mode<synchronous>, transform_indices = @transform_9, window_bounds = array<i64: 16, 1>}, {transform_indices = @transform_10, window_bounds = array<i64: 1, 16, 256>}]} {
    %c0 = arith.constant 0 : index
    %c0_0 = arith.constant 0 : index
    %c0_1 = arith.constant 0 : index
    %0 = vector.load %arg1[%c0, %c0_0, %c0_1] : memref<1x8x256xbf16, #tpu.memory_space<vmem>>, vector<1x8x256xbf16>
    %1 = vector.shape_cast %0 : vector<1x8x256xbf16> to vector<8x256xbf16>
    %2 = arith.extf %1 : vector<8x256xbf16> to vector<8x256xf32>
    %c0_2 = arith.constant 0 : index
    %c0_3 = arith.constant 0 : index
    %3 = vector.load %arg2[%c0_2, %c0_3] : memref<1x256xi32, #tpu.memory_space<vmem>>, vector<1x256xi32>
    %c0_4 = arith.constant 0 : index
    %c0_5 = arith.constant 0 : index
    %4 = vector.load %arg3[%c0_4, %c0_5] : memref<256x1xi32, #tpu.memory_space<vmem>>, vector<256x1xi32>
    %c0_i32 = arith.constant 0 : i32
    %5 = vector.broadcast %c0_i32 : i32 to vector<1x256xi32>
    %6 = arith.cmpi sge, %3, %5 : vector<1x256xi32>
    %7 = vector.broadcast %4 : vector<256x1xi32> to vector<256x256xi32>
    %8 = vector.broadcast %3 : vector<1x256xi32> to vector<256x256xi32>
    %9 = arith.cmpi eq, %7, %8 : vector<256x256xi32>
    %cst = arith.constant 0.000000e+00 : f32
    %cst_6 = arith.constant -1.000000e+09 : f32
    %10 = vector.broadcast %cst : f32 to vector<256x256xf32>
    %11 = vector.broadcast %cst_6 : f32 to vector<256x256xf32>
    %12 = arith.select %9, %10, %11 : vector<256x256xi1>, vector<256x256xf32>
    %c0_7 = arith.constant 0 : index
    %c0_8 = arith.constant 0 : index
    %13 = vector.load %arg4[%c0_7, %c0_8] : memref<16x72xbf16, #tpu.memory_space<vmem>>, vector<16x72xbf16>
    %14 = vector.extract_strided_slice %2 {offsets = [0, 239], sizes = [8, 17], strides = [1, 1]} : vector<8x256xf32> to vector<8x17xf32>
    %15 = vector.extract_strided_slice %2 {offsets = [0, 0], sizes = [8, 239], strides = [1, 1]} : vector<8x256xf32> to vector<8x239xf32>
    %16 = tpu.concatenate %14, %15 in 1 : vector<8x17xf32>, vector<8x239xf32> -> vector<8x256xf32>
    %17 = vector.extract_strided_slice %2 {offsets = [0, 240], sizes = [8, 16], strides = [1, 1]} : vector<8x256xf32> to vector<8x16xf32>
    %18 = vector.extract_strided_slice %2 {offsets = [0, 0], sizes = [8, 240], strides = [1, 1]} : vector<8x256xf32> to vector<8x240xf32>
    %19 = tpu.concatenate %17, %18 in 1 : vector<8x16xf32>, vector<8x240xf32> -> vector<8x256xf32>
    %20 = vector.extract_strided_slice %2 {offsets = [0, 241], sizes = [8, 15], strides = [1, 1]} : vector<8x256xf32> to vector<8x15xf32>
    %21 = vector.extract_strided_slice %2 {offsets = [0, 0], sizes = [8, 241], strides = [1, 1]} : vector<8x256xf32> to vector<8x241xf32>
    %22 = tpu.concatenate %20, %21 in 1 : vector<8x15xf32>, vector<8x241xf32> -> vector<8x256xf32>
    %23 = vector.extract_strided_slice %2 {offsets = [0, 255], sizes = [8, 1], strides = [1, 1]} : vector<8x256xf32> to vector<8x1xf32>
    %24 = vector.extract_strided_slice %2 {offsets = [0, 0], sizes = [8, 255], strides = [1, 1]} : vector<8x256xf32> to vector<8x255xf32>
    %25 = tpu.concatenate %23, %24 in 1 : vector<8x1xf32>, vector<8x255xf32> -> vector<8x256xf32>
    %26 = vector.extract_strided_slice %2 {offsets = [0, 1], sizes = [8, 255], strides = [1, 1]} : vector<8x256xf32> to vector<8x255xf32>
    %27 = vector.extract_strided_slice %2 {offsets = [0, 0], sizes = [8, 1], strides = [1, 1]} : vector<8x256xf32> to vector<8x1xf32>
    %28 = tpu.concatenate %26, %27 in 1 : vector<8x255xf32>, vector<8x1xf32> -> vector<8x256xf32>
    %29 = vector.extract_strided_slice %2 {offsets = [0, 15], sizes = [8, 241], strides = [1, 1]} : vector<8x256xf32> to vector<8x241xf32>
    %30 = vector.extract_strided_slice %2 {offsets = [0, 0], sizes = [8, 15], strides = [1, 1]} : vector<8x256xf32> to vector<8x15xf32>
    %31 = tpu.concatenate %29, %30 in 1 : vector<8x241xf32>, vector<8x15xf32> -> vector<8x256xf32>
    %32 = vector.extract_strided_slice %2 {offsets = [0, 16], sizes = [8, 240], strides = [1, 1]} : vector<8x256xf32> to vector<8x240xf32>
    %33 = vector.extract_strided_slice %2 {offsets = [0, 0], sizes = [8, 16], strides = [1, 1]} : vector<8x256xf32> to vector<8x16xf32>
    %34 = tpu.concatenate %32, %33 in 1 : vector<8x240xf32>, vector<8x16xf32> -> vector<8x256xf32>
    %35 = vector.extract_strided_slice %2 {offsets = [0, 17], sizes = [8, 239], strides = [1, 1]} : vector<8x256xf32> to vector<8x239xf32>
    %36 = vector.extract_strided_slice %2 {offsets = [0, 0], sizes = [8, 17], strides = [1, 1]} : vector<8x256xf32> to vector<8x17xf32>
    %37 = tpu.concatenate %35, %36 in 1 : vector<8x239xf32>, vector<8x17xf32> -> vector<8x256xf32>
    %38 = tpu.concatenate %16, %19, %22, %25, %2, %28, %31, %34, %37 in 0 : vector<8x256xf32>, vector<8x256xf32>, vector<8x256xf32>, vector<8x256xf32>, vector<8x256xf32>, vector<8x256xf32>, vector<8x256xf32>, vector<8x256xf32>, vector<8x256xf32> -> vector<72x256xf32>
    %39 = arith.truncf %38 : vector<72x256xf32> to vector<72x256xbf16>
    %cst_9 = arith.constant dense<0.000000e+00> : vector<16x256xf32>
    %40 = tpu.matmul %13, %39, %cst_9 {dimension_numbers = #tpu.dot_dimension_numbers<[1], [0], [0], [1], [0, 0, 1, 1], [], []>} : vector<16x72xbf16>, vector<72x256xbf16>, vector<16x256xf32> -> vector<16x256xf32>
    %c0_10 = arith.constant 0 : index
    %c0_11 = arith.constant 0 : index
    %41 = vector.load %arg5[%c0_10, %c0_11] : memref<16x1xf32, #tpu.memory_space<vmem>>, vector<16x1xf32>
    %42 = vector.broadcast %41 : vector<16x1xf32> to vector<16x256xf32>
    %43 = arith.addf %40, %42 : vector<16x256xf32>
    %cst_12 = arith.constant 0.000000e+00 : f32
    %44 = vector.broadcast %cst_12 : f32 to vector<16x256xf32>
    %45 = arith.maximumf %43, %44 : vector<16x256xf32>
    %cst_13 = arith.constant 0.000000e+00 : f32
    %46 = vector.shape_cast %6 : vector<1x256xi1> to vector<1x256xi1>
    %47 = vector.broadcast %46 : vector<1x256xi1> to vector<16x256xi1>
    %48 = vector.broadcast %cst_13 : f32 to vector<16x256xf32>
    %49 = arith.select %47, %45, %48 : vector<16x256xi1>, vector<16x256xf32>
    %c0_14 = arith.constant 0 : index
    %c0_15 = arith.constant 0 : index
    %50 = vector.load %arg6[%c0_14, %c0_15] : memref<16x152xbf16, #tpu.memory_space<vmem>>, vector<16x152xbf16>
    %51 = vector.extract_strided_slice %49 {offsets = [0, 239], sizes = [16, 17], strides = [1, 1]} : vector<16x256xf32> to vector<16x17xf32>
    %52 = vector.extract_strided_slice %49 {offsets = [0, 0], sizes = [16, 239], strides = [1, 1]} : vector<16x256xf32> to vector<16x239xf32>
    %53 = tpu.concatenate %51, %52 in 1 : vector<16x17xf32>, vector<16x239xf32> -> vector<16x256xf32>
    %54 = vector.extract_strided_slice %49 {offsets = [0, 240], sizes = [16, 16], strides = [1, 1]} : vector<16x256xf32> to vector<16x16xf32>
    %55 = vector.extract_strided_slice %49 {offsets = [0, 0], sizes = [16, 240], strides = [1, 1]} : vector<16x256xf32> to vector<16x240xf32>
    %56 = tpu.concatenate %54, %55 in 1 : vector<16x16xf32>, vector<16x240xf32> -> vector<16x256xf32>
    %57 = vector.extract_strided_slice %49 {offsets = [0, 241], sizes = [16, 15], strides = [1, 1]} : vector<16x256xf32> to vector<16x15xf32>
    %58 = vector.extract_strided_slice %49 {offsets = [0, 0], sizes = [16, 241], strides = [1, 1]} : vector<16x256xf32> to vector<16x241xf32>
    %59 = tpu.concatenate %57, %58 in 1 : vector<16x15xf32>, vector<16x241xf32> -> vector<16x256xf32>
    %60 = vector.extract_strided_slice %49 {offsets = [0, 255], sizes = [16, 1], strides = [1, 1]} : vector<16x256xf32> to vector<16x1xf32>
    %61 = vector.extract_strided_slice %49 {offsets = [0, 0], sizes = [16, 255], strides = [1, 1]} : vector<16x256xf32> to vector<16x255xf32>
    %62 = tpu.concatenate %60, %61 in 1 : vector<16x1xf32>, vector<16x255xf32> -> vector<16x256xf32>
    %63 = vector.extract_strided_slice %49 {offsets = [0, 1], sizes = [16, 255], strides = [1, 1]} : vector<16x256xf32> to vector<16x255xf32>
    %64 = vector.extract_strided_slice %49 {offsets = [0, 0], sizes = [16, 1], strides = [1, 1]} : vector<16x256xf32> to vector<16x1xf32>
    %65 = tpu.concatenate %63, %64 in 1 : vector<16x255xf32>, vector<16x1xf32> -> vector<16x256xf32>
    %66 = vector.extract_strided_slice %49 {offsets = [0, 15], sizes = [16, 241], strides = [1, 1]} : vector<16x256xf32> to vector<16x241xf32>
    %67 = vector.extract_strided_slice %49 {offsets = [0, 0], sizes = [16, 15], strides = [1, 1]} : vector<16x256xf32> to vector<16x15xf32>
    %68 = tpu.concatenate %66, %67 in 1 : vector<16x241xf32>, vector<16x15xf32> -> vector<16x256xf32>
    %69 = vector.extract_strided_slice %49 {offsets = [0, 16], sizes = [16, 240], strides = [1, 1]} : vector<16x256xf32> to vector<16x240xf32>
    %70 = vector.extract_strided_slice %49 {offsets = [0, 0], sizes = [16, 16], strides = [1, 1]} : vector<16x256xf32> to vector<16x16xf32>
    %71 = tpu.concatenate %69, %70 in 1 : vector<16x240xf32>, vector<16x16xf32> -> vector<16x256xf32>
    %72 = vector.extract_strided_slice %49 {offsets = [0, 17], sizes = [16, 239], strides = [1, 1]} : vector<16x256xf32> to vector<16x239xf32>
    %73 = vector.extract_strided_slice %49 {offsets = [0, 0], sizes = [16, 17], strides = [1, 1]} : vector<16x256xf32> to vector<16x17xf32>
    %74 = tpu.concatenate %72, %73 in 1 : vector<16x239xf32>, vector<16x17xf32> -> vector<16x256xf32>
    %75 = tpu.concatenate %53, %56, %59, %62, %49, %65, %68, %71, %74, %2 in 0 : vector<16x256xf32>, vector<16x256xf32>, vector<16x256xf32>, vector<16x256xf32>, vector<16x256xf32>, vector<16x256xf32>, vector<16x256xf32>, vector<16x256xf32>, vector<16x256xf32>, vector<8x256xf32> -> vector<152x256xf32>
    %76 = arith.truncf %75 : vector<152x256xf32> to vector<152x256xbf16>
    %cst_16 = arith.constant dense<0.000000e+00> : vector<16x256xf32>
    %77 = tpu.matmul %50, %76, %cst_16 {dimension_numbers = #tpu.dot_dimension_numbers<[1], [0], [0], [1], [0, 0, 1, 1], [], []>} : vector<16x152xbf16>, vector<152x256xbf16>, vector<16x256xf32> -> vector<16x256xf32>
    %c0_17 = arith.constant 0 : index
    %c0_18 = arith.constant 0 : index
    %78 = vector.load %arg7[%c0_17, %c0_18] : memref<16x1xf32, #tpu.memory_space<vmem>>, vector<16x1xf32>
    %79 = vector.broadcast %78 : vector<16x1xf32> to vector<16x256xf32>
    %80 = arith.addf %77, %79 : vector<16x256xf32>
    %cst_19 = arith.constant 0.000000e+00 : f32
    %81 = vector.broadcast %cst_19 : f32 to vector<16x256xf32>
    %82 = arith.maximumf %80, %81 : vector<16x256xf32>
    %c0_20 = arith.constant 0 : index
    %c0_21 = arith.constant 0 : index
    %83 = vector.load %arg8[%c0_20, %c0_21] : memref<64x16xbf16, #tpu.memory_space<vmem>>, vector<64x16xbf16>
    %84 = arith.truncf %82 : vector<16x256xf32> to vector<16x256xbf16>
    %cst_22 = arith.constant dense<0.000000e+00> : vector<64x256xf32>
    %85 = tpu.matmul %83, %84, %cst_22 {dimension_numbers = #tpu.dot_dimension_numbers<[1], [0], [0], [1], [0, 0, 1, 1], [], []>} : vector<64x16xbf16>, vector<16x256xbf16>, vector<64x256xf32> -> vector<64x256xf32>
    %c0_23 = arith.constant 0 : index
    %c0_24 = arith.constant 0 : index
    %86 = vector.load %arg9[%c0_23, %c0_24] : memref<64x1xf32, #tpu.memory_space<vmem>>, vector<64x1xf32>
    %87 = vector.broadcast %86 : vector<64x1xf32> to vector<64x256xf32>
    %88 = arith.addf %85, %87 : vector<64x256xf32>
    %cst_25 = arith.constant 0.000000e+00 : f32
    %89 = vector.broadcast %cst_25 : f32 to vector<16x256xf32>
    %90 = vector.extract_strided_slice %88 {offsets = [0, 0], sizes = [8, 256], strides = [1, 1]} : vector<64x256xf32> to vector<8x256xf32>
    %91 = arith.truncf %90 : vector<8x256xf32> to vector<8x256xbf16>
    %92 = vector.extract_strided_slice %88 {offsets = [16, 0], sizes = [8, 256], strides = [1, 1]} : vector<64x256xf32> to vector<8x256xf32>
    %93 = arith.truncf %92 : vector<8x256xf32> to vector<8x256xbf16>
    %94 = vector.extract_strided_slice %88 {offsets = [32, 0], sizes = [16, 256], strides = [1, 1]} : vector<64x256xf32> to vector<16x256xf32>
    %95 = arith.truncf %94 : vector<16x256xf32> to vector<16x256xbf16>
    %cst_26 = arith.constant dense<0.000000e+00> : vector<256x256xf32>
    %96 = tpu.matmul %93, %91, %cst_26 {dimension_numbers = #tpu.dot_dimension_numbers<[0], [0], [1], [1], [0, 1, 1, 1], [], []>} : vector<8x256xbf16>, vector<8x256xbf16>, vector<256x256xf32> -> vector<256x256xf32>
    %97 = arith.addf %96, %12 : vector<256x256xf32>
    %cst_27 = arith.constant dense<0xFF800000> : vector<256xf32>
    %98 = vector.multi_reduction <maximumf>, %97, %cst_27 [0] : vector<256x256xf32> to vector<256xf32>
    %99 = vector.shape_cast %98 : vector<256xf32> to vector<1x256xf32>
    %100 = vector.broadcast %99 : vector<1x256xf32> to vector<256x256xf32>
    %101 = arith.subf %97, %100 : vector<256x256xf32>
    %102 = math.exp %101 : vector<256x256xf32>
    %cst_28 = arith.constant dense<0.000000e+00> : vector<256xf32>
    %103 = vector.multi_reduction <add>, %102, %cst_28 [0] : vector<256x256xf32> to vector<256xf32>
    %104 = vector.shape_cast %103 : vector<256xf32> to vector<1x256xf32>
    %105 = tpu.reciprocal %104 {approx = true} : vector<1x256xf32> -> vector<1x256xf32>
    %106 = vector.broadcast %105 : vector<1x256xf32> to vector<256x256xf32>
    %107 = arith.mulf %102, %106 : vector<256x256xf32>
    %108 = arith.truncf %107 : vector<256x256xf32> to vector<256x256xbf16>
    %cst_29 = arith.constant dense<0.000000e+00> : vector<16x256xf32>
    %109 = tpu.matmul %95, %108, %cst_29 {dimension_numbers = #tpu.dot_dimension_numbers<[1], [0], [0], [1], [0, 0, 1, 1], [], []>} : vector<16x256xbf16>, vector<256x256xbf16>, vector<16x256xf32> -> vector<16x256xf32>
    %110 = arith.addf %89, %109 : vector<16x256xf32>
    %111 = vector.extract_strided_slice %88 {offsets = [8, 0], sizes = [8, 256], strides = [1, 1]} : vector<64x256xf32> to vector<8x256xf32>
    %112 = arith.truncf %111 : vector<8x256xf32> to vector<8x256xbf16>
    %113 = vector.extract_strided_slice %88 {offsets = [24, 0], sizes = [8, 256], strides = [1, 1]} : vector<64x256xf32> to vector<8x256xf32>
    %114 = arith.truncf %113 : vector<8x256xf32> to vector<8x256xbf16>
    %115 = vector.extract_strided_slice %88 {offsets = [48, 0], sizes = [16, 256], strides = [1, 1]} : vector<64x256xf32> to vector<16x256xf32>
    %116 = arith.truncf %115 : vector<16x256xf32> to vector<16x256xbf16>
    %cst_30 = arith.constant dense<0.000000e+00> : vector<256x256xf32>
    %117 = tpu.matmul %114, %112, %cst_30 {dimension_numbers = #tpu.dot_dimension_numbers<[0], [0], [1], [1], [0, 1, 1, 1], [], []>} : vector<8x256xbf16>, vector<8x256xbf16>, vector<256x256xf32> -> vector<256x256xf32>
    %118 = arith.addf %117, %12 : vector<256x256xf32>
    %cst_31 = arith.constant dense<0xFF800000> : vector<256xf32>
    %119 = vector.multi_reduction <maximumf>, %118, %cst_31 [0] : vector<256x256xf32> to vector<256xf32>
    %120 = vector.shape_cast %119 : vector<256xf32> to vector<1x256xf32>
    %121 = vector.broadcast %120 : vector<1x256xf32> to vector<256x256xf32>
    %122 = arith.subf %118, %121 : vector<256x256xf32>
    %123 = math.exp %122 : vector<256x256xf32>
    %cst_32 = arith.constant dense<0.000000e+00> : vector<256xf32>
    %124 = vector.multi_reduction <add>, %123, %cst_32 [0] : vector<256x256xf32> to vector<256xf32>
    %125 = vector.shape_cast %124 : vector<256xf32> to vector<1x256xf32>
    %126 = tpu.reciprocal %125 {approx = true} : vector<1x256xf32> -> vector<1x256xf32>
    %127 = vector.broadcast %126 : vector<1x256xf32> to vector<256x256xf32>
    %128 = arith.mulf %123, %127 : vector<256x256xf32>
    %129 = arith.truncf %128 : vector<256x256xf32> to vector<256x256xbf16>
    %cst_33 = arith.constant dense<0.000000e+00> : vector<16x256xf32>
    %130 = tpu.matmul %116, %129, %cst_33 {dimension_numbers = #tpu.dot_dimension_numbers<[1], [0], [0], [1], [0, 0, 1, 1], [], []>} : vector<16x256xbf16>, vector<256x256xbf16>, vector<16x256xf32> -> vector<16x256xf32>
    %131 = arith.addf %110, %130 : vector<16x256xf32>
    %c0_34 = arith.constant 0 : index
    %c0_35 = arith.constant 0 : index
    %132 = vector.load %arg10[%c0_34, %c0_35] : memref<16x1xf32, #tpu.memory_space<vmem>>, vector<16x1xf32>
    %133 = vector.broadcast %132 : vector<16x1xf32> to vector<16x256xf32>
    %134 = arith.addf %131, %133 : vector<16x256xf32>
    %135 = arith.addf %134, %82 : vector<16x256xf32>
    %136 = arith.truncf %135 : vector<16x256xf32> to vector<16x256xbf16>
    %c0_36 = arith.constant 0 : index
    %c0_37 = arith.constant 0 : index
    %c0_38 = arith.constant 0 : index
    %137 = vector.load %arg11[%c0_36, %c0_37, %c0_38] : memref<1x16x256xbf16, #tpu.memory_space<vmem>>, vector<1x16x256xbf16>
    %138 = vector.shape_cast %137 : vector<1x16x256xbf16> to vector<16x256xbf16>
    %139 = vector.shape_cast %136 : vector<16x256xbf16> to vector<1x16x256xbf16>
    tpu.vector_store %arg11[%c0_36, %c0_37, %c0_38], %139 {strides = array<i32>} : memref<1x16x256xbf16, #tpu.memory_space<vmem>>, vector<1x16x256xbf16>,
    return
  }
  func.func @transform_0(%arg0: i32) -> (i32, i32, i32) {
    %c0_i32 = arith.constant 0 : i32
    %c0_i32_0 = arith.constant 0 : i32
    %c0_i32_1 = arith.constant 0 : i32
    return %arg0, %c0_i32, %c0_i32_0 : i32, i32, i32
  }
  func.func @transform_1(%arg0: i32) -> (i32, i32) {
    %c0_i32 = arith.constant 0 : i32
    %c0_i32_0 = arith.constant 0 : i32
    %c0_i32_1 = arith.constant 0 : i32
    return %c0_i32, %c0_i32_0 : i32, i32
  }
  func.func @transform_2(%arg0: i32) -> (i32, i32) {
    %c0_i32 = arith.constant 0 : i32
    %c0_i32_0 = arith.constant 0 : i32
    %c0_i32_1 = arith.constant 0 : i32
    return %c0_i32, %c0_i32_0 : i32, i32
  }
  func.func @transform_3(%arg0: i32) -> (i32, i32) {
    %c0_i32 = arith.constant 0 : i32
    %c0_i32_0 = arith.constant 0 : i32
    %c0_i32_1 = arith.constant 0 : i32
    return %c0_i32, %c0_i32_0 : i32, i32
  }
  func.func @transform_4(%arg0: i32) -> (i32, i32) {
    %c0_i32 = arith.constant 0 : i32
    %c0_i32_0 = arith.constant 0 : i32
    %c0_i32_1 = arith.constant 0 : i32
    return %c0_i32, %c0_i32_0 : i32, i32
  }
  func.func @transform_5(%arg0: i32) -> (i32, i32) {
    %c0_i32 = arith.constant 0 : i32
    %c0_i32_0 = arith.constant 0 : i32
    %c0_i32_1 = arith.constant 0 : i32
    return %c0_i32, %c0_i32_0 : i32, i32
  }
  func.func @transform_6(%arg0: i32) -> (i32, i32) {
    %c0_i32 = arith.constant 0 : i32
    %c0_i32_0 = arith.constant 0 : i32
    %c0_i32_1 = arith.constant 0 : i32
    return %c0_i32, %c0_i32_0 : i32, i32
  }
  func.func @transform_7(%arg0: i32) -> (i32, i32) {
    %c0_i32 = arith.constant 0 : i32
    %c0_i32_0 = arith.constant 0 : i32
    %c0_i32_1 = arith.constant 0 : i32
    return %c0_i32, %c0_i32_0 : i32, i32
  }
  func.func @transform_8(%arg0: i32) -> (i32, i32) {
    %c0_i32 = arith.constant 0 : i32
    %c0_i32_0 = arith.constant 0 : i32
    %c0_i32_1 = arith.constant 0 : i32
    return %c0_i32, %c0_i32_0 : i32, i32
  }
  func.func @transform_9(%arg0: i32) -> (i32, i32) {
    %c0_i32 = arith.constant 0 : i32
    %c0_i32_0 = arith.constant 0 : i32
    %c0_i32_1 = arith.constant 0 : i32
    return %c0_i32, %c0_i32_0 : i32, i32
  }
  func.func @transform_10(%arg0: i32) -> (i32, i32, i32) {
    %c0_i32 = arith.constant 0 : i32
    %c0_i32_0 = arith.constant 0 : i32
    %c0_i32_1 = arith.constant 0 : i32
    return %arg0, %c0_i32, %c0_i32_0 : i32, i32, i32
  }
}

</mosaic_0001>

<llo_original>
// kernel: res_msa_forward.1
$region0: #{res_msa_forward.1}
  #allocation0 [shape = 'u32[]', space=smem, size = 0x4, offset = 0x4, fixed_abs, tag = 'smem constant byte address 0x4 - core index']
  #allocation1 [shape = 'u32[144,128]{1,0:T(1,128)}', space=vmem, size = 0x12000, scoped, tag = 'internal scratch']
  %s0 = inlined_call_operand.vmem [shape: bf16[2,8,256], index: 0, kind: input, shape index: {}]
  %s1 = inlined_call_operand.vmem [shape: s32[1,256], index: 1, kind: input, shape index: {}]
  %s2 = inlined_call_operand.vmem [shape: s32[256,1], index: 2, kind: input, shape index: {}]
  %s3 = inlined_call_operand.vmem [shape: bf16[16,72], index: 3, kind: input, shape index: {}]
  %s4 = inlined_call_operand.vmem [shape: f32[16,1], index: 4, kind: input, shape index: {}]
  %s5 = inlined_call_operand.vmem [shape: bf16[16,152], index: 5, kind: input, shape index: {}]
  %s6 = inlined_call_operand.vmem [shape: f32[16,1], index: 6, kind: input, shape index: {}]
  %s7 = inlined_call_operand.vmem [shape: bf16[64,16], index: 7, kind: input, shape index: {}]
  %s8 = inlined_call_operand.vmem [shape: f32[64,1], index: 8, kind: input, shape index: {}]
  %s9 = inlined_call_operand.vmem [shape: f32[16,1], index: 9, kind: input, shape index: {}]
  %s10 = inlined_call_operand.vmem [shape: bf16[2,16,256], index: 10, kind: output, shape index: {}]
  %s11 = sld [smem:[#allocation0]]
  $region73: #{res_msa_forward.1} parent=0
    _
  %s13 = ssub.s32 1, %s11
  %s14 = scalar_select 0, %s13, %s11
  loop: start=0, step=1, limit=4
  $region2: #{res_msa_forward.1} parent=0 // loop_pre_header
    _
  $region3: #{res_msa_forward.1} parent=0 // loop_header
    %s16 = sphi 0, %s20
    %p17 = scmp.ge.s32.totalorder %s16, 4
    %s26 = sphi 0, %s28
    %s29 = sphi 0, %s26
    %s30 = sphi 0, %s29
    %s46 = sphi 0, %s30
    %s50 = sphi 0, %s50
    %s52 = sphi 0, %s50
    %s53 = sphi 0, %s52
    %s67 = sphi 0, %s53
    %s71 = sphi 0, %s71
    %s73 = sphi 0, %s71
    %s74 = sphi 0, %s73
    %s88 = sphi 0, %s74
    %s92 = sphi 0, %s92
    %s94 = sphi 0, %s92
    %s95 = sphi 0, %s94
    %s109 = sphi 0, %s95
    %s113 = sphi 0, %s113
    %s115 = sphi 0, %s113
    %s116 = sphi 0, %s115
    %s130 = sphi 0, %s116
    %s134 = sphi 0, %s134
    %s136 = sphi 0, %s134
    %s137 = sphi 0, %s136
    %s151 = sphi 0, %s137
    %s155 = sphi 0, %s155
    %s157 = sphi 0, %s155
    %s158 = sphi 0, %s157
    %s172 = sphi 0, %s158
    %s176 = sphi 0, %s176
    %s178 = sphi 0, %s176
    %s179 = sphi 0, %s178
    %s193 = sphi 0, %s179
    %s197 = sphi 0, %s197
    %s199 = sphi 0, %s197
    %s200 = sphi 0, %s199
    %s214 = sphi 0, %s200
    %s218 = sphi 0, %s218
    %s220 = sphi 0, %s218
    %s221 = sphi 0, %s220
    %s235 = sphi 0, %s221
    %s241 = sphi 0, %s243
    %s244 = sphi 0, %s241
    %s245 = sphi 0, %s244
    %s261 = sphi 0, %s245
  $region4: #{res_msa_forward.1} parent=0 // loop_header_branch
    %19 = sbr.rel (%p17) target = $region8
  $region5: #{res_msa_forward.1} parent=0 // loop_body
    %s21 = ssub.s32 %s16, 1
    %s22 = ssub.s32 %s16, 2
    %s23 = sadd.s32 %s16, 1
    %s24 = ssub.s32 %s16, %s23
    %p25 = scmp.eq.s32.totalorder %s24, 0
    %s27 = sadd.s32 %s26, 1
    %s28 = scalar_select %p25, %s26, %s27
    %p31 = pneg %p25
    %p32 = scmp.eq.s32.totalorder %s16, 1
    %p33 = por %p31, %p32
    %p34 = scmp.ne.s32.totalorder %s26, %s29
    %p35 = scmp.eq.s32.totalorder %s16, 0
    %p36 = por %p34, %p35
    %p37 = scmp.ne.s32.totalorder %s26, %s29
    %p38 = scmp.eq.s32.totalorder %s21, 1
    %p39 = por %p37, %p38
    %p40 = scmp.ne.s32.totalorder %s29, %s30
    %p41 = scmp.eq.s32.totalorder %s21, 0
    %p42 = por %p40, %p41
    %p43 = scmp.ne.s32.totalorder %s29, %s30
    %p44 = scmp.eq.s32.totalorder %s22, 1
    %p45 = por %p43, %p44
    %p47 = scmp.ne.s32.totalorder %s30, %s46
    %p48 = scmp.eq.s32.totalorder %s22, 0
    %p49 = por %p47, %p48
    %s51 = sadd.s32 %s50, 1
    %p54 = scmp.eq.s32.totalorder %s16, 1
    %p55 = scmp.ne.s32.totalorder %s50, %s52
    %p56 = scmp.eq.s32.totalorder %s16, 0
    %p57 = por %p55, %p56
    %p58 = scmp.ne.s32.totalorder %s50, %s52
    %p59 = scmp.eq.s32.totalorder %s21, 1
    %p60 = por %p58, %p59
    %p61 = scmp.ne.s32.totalorder %s52, %s53
    %p62 = scmp.eq.s32.totalorder %s21, 0
    %p63 = por %p61, %p62
    %p64 = scmp.ne.s32.totalorder %s52, %s53
    %p65 = scmp.eq.s32.totalorder %s22, 1
    %p66 = por %p64, %p65
    %p68 = scmp.ne.s32.totalorder %s53, %s67
    %p69 = scmp.eq.s32.totalorder %s22, 0
    %p70 = por %p68, %p69
    %s72 = sadd.s32 %s71, 1
    %p75 = scmp.eq.s32.totalorder %s16, 1
    %p76 = scmp.ne.s32.totalorder %s71, %s73
    %p77 = scmp.eq.s32.totalorder %s16, 0
    %p78 = por %p76, %p77
    %p79 = scmp.ne.s32.totalorder %s71, %s73
    %p80 = scmp.eq.s32.totalorder %s21, 1
    %p81 = por %p79, %p80
    %p82 = scmp.ne.s32.totalorder %s73, %s74
    %p83 = scmp.eq.s32.totalorder %s21, 0
    %p84 = por %p82, %p83
    %p85 = scmp.ne.s32.totalorder %s73, %s74
    %p86 = scmp.eq.s32.totalorder %s22, 1
    %p87 = por %p85, %p86
    %p89 = scmp.ne.s32.totalorder %s74, %s88
    %p90 = scmp.eq.s32.totalorder %s22, 0
    %p91 = por %p89, %p90
    %s93 = sadd.s32 %s92, 1
    %p96 = scmp.eq.s32.totalorder %s16, 1
    %p97 = scmp.ne.s32.totalorder %s92, %s94
    %p98 = scmp.eq.s32.totalorder %s16, 0
    %p99 = por %p97, %p98
    %p100 = scmp.ne.s32.totalorder %s92, %s94
    %p101 = scmp.eq.s32.totalorder %s21, 1
    %p102 = por %p100, %p101
    %p103 = scmp.ne.s32.totalorder %s94, %s95
    %p104 = scmp.eq.s32.totalorder %s21, 0
    %p105 = por %p103, %p104
    %p106 = scmp.ne.s32.totalorder %s94, %s95
    %p107 = scmp.eq.s32.totalorder %s22, 1
    %p108 = por %p106, %p107
    %p110 = scmp.ne.s32.totalorder %s95, %s109
    %p111 = scmp.eq.s32.totalorder %s22, 0
    %p112 = por %p110, %p111
    %s114 = sadd.s32 %s113, 1
    %p117 = scmp.eq.s32.totalorder %s16, 1
    %p118 = scmp.ne.s32.totalorder %s113, %s115
    %p119 = scmp.eq.s32.totalorder %s16, 0
    %p120 = por %p118, %p119
    %p121 = scmp.ne.s32.totalorder %s113, %s115
    %p122 = scmp.eq.s32.totalorder %s21, 1
    %p123 = por %p121, %p122
    %p124 = scmp.ne.s32.totalorder %s115, %s116
    %p125 = scmp.eq.s32.totalorder %s21, 0
    %p126 = por %p124, %p125
    %p127 = scmp.ne.s32.totalorder %s115, %s116
    %p128 = scmp.eq.s32.totalorder %s22, 1
    %p129 = por %p127, %p128
    %p131 = scmp.ne.s32.totalorder %s116, %s130
    %p132 = scmp.eq.s32.totalorder %s22, 0
    %p133 = por %p131, %p132
    %s135 = sadd.s32 %s134, 1
    %p138 = scmp.eq.s32.totalorder %s16, 1
    %p139 = scmp.ne.s32.totalorder %s134, %s136
    %p140 = scmp.eq.s32.totalorder %s16, 0
    %p141 = por %p139, %p140
    %p142 = scmp.ne.s32.totalorder %s134, %s136
    %p143 = scmp.eq.s32.totalorder %s21, 1
    %p144 = por %p142, %p143
    %p145 = scmp.ne.s32.totalorder %s136, %s137
    %p146 = scmp.eq.s32.totalorder %s21, 0
    %p147 = por %p145, %p146
    %p148 = scmp.ne.s32.totalorder %s136, %s137
    %p149 = scmp.eq.s32.totalorder %s22, 1
    %p150 = por %p148, %p149
    %p152 = scmp.ne.s32.totalorder %s137, %s151
    %p153 = scmp.eq.s32.totalorder %s22, 0
    %p154 = por %p152, %p153
    %s156 = sadd.s32 %s155, 1
    %p159 = scmp.eq.s32.totalorder %s16, 1
    %p160 = scmp.ne.s32.totalorder %s155, %s157
    %p161 = scmp.eq.s32.totalorder %s16, 0
    %p162 = por %p160, %p161
    %p163 = scmp.ne.s32.totalorder %s155, %s157
    %p164 = scmp.eq.s32.totalorder %s21, 1
    %p165 = por %p163, %p164
    %p166 = scmp.ne.s32.totalorder %s157, %s158
    %p167 = scmp.eq.s32.totalorder %s21, 0
    %p168 = por %p166, %p167
    %p169 = scmp.ne.s32.totalorder %s157, %s158
    %p170 = scmp.eq.s32.totalorder %s22, 1
    %p171 = por %p169, %p170
    %p173 = scmp.ne.s32.totalorder %s158, %s172
    %p174 = scmp.eq.s32.totalorder %s22, 0
    %p175 = por %p173, %p174
    %s177 = sadd.s32 %s176, 1
    %p180 = scmp.eq.s32.totalorder %s16, 1
    %p181 = scmp.ne.s32.totalorder %s176, %s178
    %p182 = scmp.eq.s32.totalorder %s16, 0
    %p183 = por %p181, %p182
    %p184 = scmp.ne.s32.totalorder %s176, %s178
    %p185 = scmp.eq.s32.totalorder %s21, 1
    %p186 = por %p184, %p185
    %p187 = scmp.ne.s32.totalorder %s178, %s179
    %p188 = scmp.eq.s32.totalorder %s21, 0
    %p189 = por %p187, %p188
    %p190 = scmp.ne.s32.totalorder %s178, %s179
    %p191 = scmp.eq.s32.totalorder %s22, 1
    %p192 = por %p190, %p191
    %p194 = scmp.ne.s32.totalorder %s179, %s193
    %p195 = scmp.eq.s32.totalorder %s22, 0
    %p196 = por %p194, %p195
    %s198 = sadd.s32 %s197, 1
    %p201 = scmp.eq.s32.totalorder %s16, 1
    %p202 = scmp.ne.s32.totalorder %s197, %s199
    %p203 = scmp.eq.s32.totalorder %s16, 0
    %p204 = por %p202, %p203
    %p205 = scmp.ne.s32.totalorder %s197, %s199
    %p206 = scmp.eq.s32.totalorder %s21, 1
    %p207 = por %p205, %p206
    %p208 = scmp.ne.s32.totalorder %s199, %s200
    %p209 = scmp.eq.s32.totalorder %s21, 0
    %p210 = por %p208, %p209
    %p211 = scmp.ne.s32.totalorder %s199, %s200
    %p212 = scmp.eq.s32.totalorder %s22, 1
    %p213 = por %p211, %p212
    %p215 = scmp.ne.s32.totalorder %s200, %s214
    %p216 = scmp.eq.s32.totalorder %s22, 0
    %p217 = por %p215, %p216
    %s219 = sadd.s32 %s218, 1
    %p222 = scmp.eq.s32.totalorder %s16, 1
    %p223 = scmp.ne.s32.totalorder %s218, %s220
    %p224 = scmp.eq.s32.totalorder %s16, 0
    %p225 = por %p223, %p224
    %p226 = scmp.ne.s32.totalorder %s218, %s220
    %p227 = scmp.eq.s32.totalorder %s21, 1
    %p228 = por %p226, %p227
    %p229 = scmp.ne.s32.totalorder %s220, %s221
    %p230 = scmp.eq.s32.totalorder %s21, 0
    %p231 = por %p229, %p230
    %p232 = scmp.ne.s32.totalorder %s220, %s221
    %p233 = scmp.eq.s32.totalorder %s22, 1
    %p234 = por %p232, %p233
    %p236 = scmp.ne.s32.totalorder %s221, %s235
    %p237 = scmp.eq.s32.totalorder %s22, 0
    %p238 = por %p236, %p237
    %s239 = ssub.s32 %s16, %s23
    %p240 = scmp.eq.s32.totalorder %s239, 0
    %s242 = sadd.s32 %s241, 1
    %s243 = scalar_select %p240, %s241, %s242
    %p246 = pneg %p240
    %p247 = scmp.eq.s32.totalorder %s16, 1
    %p248 = por %p246, %p247
    %p249 = scmp.ne.s32.totalorder %s241, %s244
    %p250 = scmp.eq.s32.totalorder %s16, 0
    %p251 = por %p249, %p250
    %p252 = scmp.ne.s32.totalorder %s241, %s244
    %p253 = scmp.eq.s32.totalorder %s21, 1
    %p254 = por %p252, %p253
    %p255 = scmp.ne.s32.totalorder %s244, %s245
    %p256 = scmp.eq.s32.totalorder %s21, 0
    %p257 = por %p255, %p256
    %p258 = scmp.ne.s32.totalorder %s244, %s245
    %p259 = scmp.eq.s32.totalorder %s22, 1
    %p260 = por %p258, %p259
    %p262 = scmp.ne.s32.totalorder %s245, %s261
    %p263 = scmp.eq.s32.totalorder %s22, 0
    %p264 = por %p262, %p263
    %p265 = scmp.le.s32.totalorder 1, %s16
    %p266 = scmp.lt.s32.totalorder %s16, 3
    %p267 = pnand %p265, %p266
    %p268 = pneg %p267
    // Predicated region
    $region9: #{res_msa_forward.1} parent=5 // pred_check
      _
    $region10: #{res_msa_forward.1} parent=5 // pred_check_branch
      %270 = sbr.rel (%p267) target = $region12
    $region11: #{res_msa_forward.1} parent=5 // pred_region
      %s271 = ssub.s32 %s16, 1
      // Predicated region
      $region13: #{res_msa_forward.1} parent=11 // pred_check
        %p272 = pneg %p63
      $region14: #{res_msa_forward.1} parent=11 // pred_check_branch
        %274 = sbr.rel (%p272) target = $region16
      $region15: #{res_msa_forward.1} parent=11 // pred_region
        _
      $region16: #{res_msa_forward.1} parent=11 // pred_fallthru
        _
      // Predicated region
      $region17: #{res_msa_forward.1} parent=11 // pred_check
        %p275 = pneg %p84
      $region18: #{res_msa_forward.1} parent=11 // pred_check_branch
        %277 = sbr.rel (%p275) target = $region20
      $region19: #{res_msa_forward.1} parent=11 // pred_region
        _
      $region20: #{res_msa_forward.1} parent=11 // pred_fallthru
        _
      // Predicated region
      $region21: #{res_msa_forward.1} parent=11 // pred_check
        %p278 = pneg %p105
      $region22: #{res_msa_forward.1} parent=11 // pred_check_branch
        %280 = sbr.rel (%p278) target = $region24
      $region23: #{res_msa_forward.1} parent=11 // pred_region
        _
      $region24: #{res_msa_forward.1} parent=11 // pred_fallthru
        _
      // Predicated region
      $region25: #{res_msa_forward.1} parent=11 // pred_check
        %p281 = pneg %p126
      $region26: #{res_msa_forward.1} parent=11 // pred_check_branch
        %283 = sbr.rel (%p281) target = $region28
      $region27: #{res_msa_forward.1} parent=11 // pred_region
        _
      $region28: #{res_msa_forward.1} parent=11 // pred_fallthru
        _
      // Predicated region
      $region29: #{res_msa_forward.1} parent=11 // pred_check
        %p284 = pneg %p147
      $region30: #{res_msa_forward.1} parent=11 // pred_check_branch
        %286 = sbr.rel (%p284) target = $region32
      $region31: #{res_msa_forward.1} parent=11 // pred_region
        _
      $region32: #{res_msa_forward.1} parent=11 // pred_fallthru
        _
      // Predicated region
      $region33: #{res_msa_forward.1} parent=11 // pred_check
        %p287 = pneg %p168
      $region34: #{res_msa_forward.1} parent=11 // pred_check_branch
        %289 = sbr.rel (%p287) target = $region36
      $region35: #{res_msa_forward.1} parent=11 // pred_region
        _
      $region36: #{res_msa_forward.1} parent=11 // pred_fallthru
        _
      // Predicated region
      $region37: #{res_msa_forward.1} parent=11 // pred_check
        %p290 = pneg %p189
      $region38: #{res_msa_forward.1} parent=11 // pred_check_branch
        %292 = sbr.rel (%p290) target = $region40
      $region39: #{res_msa_forward.1} parent=11 // pred_region
        _
      $region40: #{res_msa_forward.1} parent=11 // pred_fallthru
        _
      // Predicated region
      $region41: #{res_msa_forward.1} parent=11 // pred_check
        %p293 = pneg %p210
      $region42: #{res_msa_forward.1} parent=11 // pred_check_branch
        %295 = sbr.rel (%p293) target = $region44
      $region43: #{res_msa_forward.1} parent=11 // pred_region
        _
      $region44: #{res_msa_forward.1} parent=11 // pred_fallthru
        _
      // Predicated region
      $region45: #{res_msa_forward.1} parent=11 // pred_check
        %p296 = pneg %p231
      $region46: #{res_msa_forward.1} parent=11 // pred_check_branch
        %298 = sbr.rel (%p296) target = $region48
      $region47: #{res_msa_forward.1} parent=11 // pred_region
        _
      $region48: #{res_msa_forward.1} parent=11 // pred_fallthru
        _
    $region12: #{res_msa_forward.1} parent=5 // pred_fallthru
      _
    %p299 = scmp.lt.s32.totalorder %s16, 2
    // Predicated region
    $region49: #{res_msa_forward.1} parent=5 // pred_check
      %p300 = pneg %p299
    $region50: #{res_msa_forward.1} parent=5 // pred_check_branch
      %302 = sbr.rel (%p300) target = $region52
    $region51: #{res_msa_forward.1} parent=5 // pred_region
      // Predicated region
      $region53: #{res_msa_forward.1} parent=51 // pred_check
        %p303 = pneg %p36
      $region54: #{res_msa_forward.1} parent=51 // pred_check_branch
        %305 = sbr.rel (%p303) target = $region56
      $region55: #{res_msa_forward.1} parent=51 // pred_region
        %p306 = scmp.lt.s32.totalorder %s16, 1
        %s307 = scalar_select %p306, %s16, 1
        %s308 = smul.addr %s307, 2
        %s309 = smul.addr %s308, 4
        %s310 = scalar_lea.vmem %s0, %s309
      $region56: #{res_msa_forward.1} parent=51 // pred_fallthru
        _
    $region52: #{res_msa_forward.1} parent=5 // pred_fallthru
      _
    %p311 = scmp.le.s32.totalorder 1, %s16
    %p312 = scmp.lt.s32.totalorder %s16, 3
    %p313 = pnand %p311, %p312
    %p314 = pneg %p313
    // Predicated region
    $region57: #{res_msa_forward.1} parent=5 // pred_check
      _
    $region58: #{res_msa_forward.1} parent=5 // pred_check_branch
      %316 = sbr.rel (%p313) target = $region60
    $region59: #{res_msa_forward.1} parent=5 // pred_region
      %s317 = ssub.s32 %s16, 1
      %p318 = scmp.lt.s32.totalorder %s21, 1
      %s319 = scalar_select %p318, %s21, 1
      %s320 = smul.addr %s319, 2
      %s321 = smul.addr %s320, 4
      %s322 = scalar_lea.vmem %s0, %s321
      %p323 = pneg %p42
      %p324 = pneg %p39
      %p325 = pneg %p63
      %p326 = pneg %p60
      %p327 = pneg %p84
      %p328 = pneg %p81
      %p329 = pneg %p105
      %p330 = pneg %p102
      %p331 = pneg %p126
      %p332 = pneg %p123
      %p333 = pneg %p147
      %p334 = pneg %p144
      %p335 = pneg %p168
      %p336 = pneg %p165
      %p337 = pneg %p189
      %p338 = pneg %p186
      %p339 = pneg %p210
      %p340 = pneg %p207
      %p341 = pneg %p231
      %p342 = pneg %p228
      %p343 = pneg %p257
      %p344 = pneg %p254
      %p345 = scmp.lt.s32.totalorder %s21, 1
      %s346 = scalar_select %p345, %s21, 1
      %s347 = smul.addr %s346, 4
      %s348 = smul.addr %s347, 4
      %s349 = scalar_lea.vmem %s10, %s348
      %p350 = scmp.lt.s32.totalorder %s21, 1
      %s351 = scalar_select %p350, %s21, 1
      %s352 = smul.addr %s351, 2
      %s353 = smul.addr %s352, 4
      %s354 = scalar_lea.vmem %s0, %s353
      %p355 = scmp.lt.s32.totalorder %s21, 1
      %s356 = scalar_select %p355, %s21, 1
      %s357 = smul.addr %s356, 4
      %s358 = smul.addr %s357, 4
      %s359 = scalar_lea.vmem %s10, %s358
      %v361 = vld [vmem:[%s354] sm:$0xff]
      %v362 = vunpack.c.l.bf16 %v361
      %v363 = vunpack.c.h.bf16 %v361
      %v364 = vld [vmem:[%s1] sm:$0x3]
      %v365 = vld [vmem:[%s2] sm:$0xff]
      %v366 = vld [vmem:[%s2 + $0x8] sm:$0xff]
      %v367 = vld [vmem:[%s2 + $0x10] sm:$0xff]
      %v368 = vld [vmem:[%s2 + $0x18] sm:$0xff]
      %v369 = vld [vmem:[%s2 + $0x20] sm:$0xff]
      %v370 = vld [vmem:[%s2 + $0x28] sm:$0xff]
      %v371 = vld [vmem:[%s2 + $0x30] sm:$0xff]
      %v372 = vld [vmem:[%s2 + $0x38] sm:$0xff]
      %v373 = vld [vmem:[%s2 + $0x40] sm:$0xff]
      %v374 = vld [vmem:[%s2 + $0x48] sm:$0xff]
      %v375 = vld [vmem:[%s2 + $0x50] sm:$0xff]
      %v376 = vld [vmem:[%s2 + $0x58] sm:$0xff]
      %v377 = vld [vmem:[%s2 + $0x60] sm:$0xff]
      %v378 = vld [vmem:[%s2 + $0x68] sm:$0xff]
      %v379 = vld [vmem:[%s2 + $0x70] sm:$0xff]
      %v380 = vld [vmem:[%s2 + $0x78] sm:$0xff]
      %v381 = vld [vmem:[%s2 + $0x80] sm:$0xff]
      %v382 = vld [vmem:[%s2 + $0x88] sm:$0xff]
      %v383 = vld [vmem:[%s2 + $0x90] sm:$0xff]
      %v384 = vld [vmem:[%s2 + $0x98] sm:$0xff]
      %v385 = vld [vmem:[%s2 + $0xa0] sm:$0xff]
      %v386 = vld [vmem:[%s2 + $0xa8] sm:$0xff]
      %v387 = vld [vmem:[%s2 + $0xb0] sm:$0xff]
      %v388 = vld [vmem:[%s2 + $0xb8] sm:$0xff]
      %v389 = vld [vmem:[%s2 + $0xc0] sm:$0xff]
      %v390 = vld [vmem:[%s2 + $0xc8] sm:$0xff]
      %v391 = vld [vmem:[%s2 + $0xd0] sm:$0xff]
      %v392 = vld [vmem:[%s2 + $0xd8] sm:$0xff]
      %v393 = vld [vmem:[%s2 + $0xe0] sm:$0xff]
      %v394 = vld [vmem:[%s2 + $0xe8] sm:$0xff]
      %v395 = vld [vmem:[%s2 + $0xf0] sm:$0xff]
      %v396 = vld [vmem:[%s2 + $0xf8] sm:$0xff]
      %vm397 = vcmp.ge.s32.totalorder %v364, 0
      %398 = vset.pattern.permute.xlu0 0
      %399 = vperm.xlu0 %398, %v365
      %v400 = vpop.permute.xlu0 %399
      %401 = vset.pattern.permute.xlu0 0
      %402 = vperm.xlu0 %401, %v366
      %v403 = vpop.permute.xlu0 %402
      %404 = vset.pattern.permute.xlu0 0
      %405 = vperm.xlu0 %404, %v367
      %v406 = vpop.permute.xlu0 %405
      %407 = vset.pattern.permute.xlu0 0
      %408 = vperm.xlu0 %407, %v368
      %v409 = vpop.permute.xlu0 %408
      %410 = vset.pattern.permute.xlu0 0
      %411 = vperm.xlu0 %410, %v369
      %v412 = vpop.permute.xlu0 %411
      %413 = vset.pattern.permute.xlu0 0
      %414 = vperm.xlu0 %413, %v370
      %v415 = vpop.permute.xlu0 %414
      %416 = vset.pattern.permute.xlu0 0
      %417 = vperm.xlu0 %416, %v371
      %v418 = vpop.permute.xlu0 %417
      %419 = vset.pattern.permute.xlu0 0
      %420 = vperm.xlu0 %419, %v372
      %v421 = vpop.permute.xlu0 %420
      %422 = vset.pattern.permute.xlu0 0
      %423 = vperm.xlu0 %422, %v373
      %v424 = vpop.permute.xlu0 %423
      %425 = vset.pattern.permute.xlu0 0
      %426 = vperm.xlu0 %425, %v374
      %v427 = vpop.permute.xlu0 %426
      %428 = vset.pattern.permute.xlu0 0
      %429 = vperm.xlu0 %428, %v375
      %v430 = vpop.permute.xlu0 %429
      %431 = vset.pattern.permute.xlu0 0
      %432 = vperm.xlu0 %431, %v376
      %v433 = vpop.permute.xlu0 %432
      %434 = vset.pattern.permute.xlu0 0
      %435 = vperm.xlu0 %434, %v377
      %v436 = vpop.permute.xlu0 %435
      %437 = vset.pattern.permute.xlu0 0
      %438 = vperm.xlu0 %437, %v378
      %v439 = vpop.permute.xlu0 %438
      %440 = vset.pattern.permute.xlu0 0
      %441 = vperm.xlu0 %440, %v379
      %v442 = vpop.permute.xlu0 %441
      %443 = vset.pattern.permute.xlu0 0
      %444 = vperm.xlu0 %443, %v380
      %v445 = vpop.permute.xlu0 %444
      %446 = vset.pattern.permute.xlu0 0
      %447 = vperm.xlu0 %446, %v381
      %v448 = vpop.permute.xlu0 %447
      %449 = vset.pattern.permute.xlu0 0
      %450 = vperm.xlu0 %449, %v382
      %v451 = vpop.permute.xlu0 %450
      %452 = vset.pattern.permute.xlu0 0
      %453 = vperm.xlu0 %452, %v383
      %v454 = vpop.permute.xlu0 %453
      %455 = vset.pattern.permute.xlu0 0
      %456 = vperm.xlu0 %455, %v384
      %v457 = vpop.permute.xlu0 %456
      %458 = vset.pattern.permute.xlu0 0
      %459 = vperm.xlu0 %458, %v385
      %v460 = vpop.permute.xlu0 %459
      %461 = vset.pattern.permute.xlu0 0
      %462 = vperm.xlu0 %461, %v386
      %v463 = vpop.permute.xlu0 %462
      %464 = vset.pattern.permute.xlu0 0
      %465 = vperm.xlu0 %464, %v387
      %v466 = vpop.permute.xlu0 %465
      %467 = vset.pattern.permute.xlu0 0
      %468 = vperm.xlu0 %467, %v388
      %v469 = vpop.permute.xlu0 %468
      %470 = vset.pattern.permute.xlu0 0
      %471 = vperm.xlu0 %470, %v389
      %v472 = vpop.permute.xlu0 %471
      %473 = vset.pattern.permute.xlu0 0
      %474 = vperm.xlu0 %473, %v390
      %v475 = vpop.permute.xlu0 %474
      %476 = vset.pattern.permute.xlu0 0
      %477 = vperm.xlu0 %476, %v391
      %v478 = vpop.permute.xlu0 %477
      %479 = vset.pattern.permute.xlu0 0
      %480 = vperm.xlu0 %479, %v392
      %v481 = vpop.permute.xlu0 %480
      %482 = vset.pattern.permute.xlu0 0
      %483 = vperm.xlu0 %482, %v393
      %v484 = vpop.permute.xlu0 %483
      %485 = vset.pattern.permute.xlu0 0
      %486 = vperm.xlu0 %485, %v394
      %v487 = vpop.permute.xlu0 %486
      %488 = vset.pattern.permute.xlu0 0
      %489 = vperm.xlu0 %488, %v395
      %v490 = vpop.permute.xlu0 %489
      %491 = vset.pattern.permute.xlu0 0
      %492 = vperm.xlu0 %491, %v396
      %v493 = vpop.permute.xlu0 %492
      %v494 = vlaneseq
      %v495 = vshrl.u32 %v494, 7
      %v496 = vsub.s32 0, %v495
      %v497 = vrot.slane %v364, %v496
      %v498 = vlaneseq
      %v499 = vshrl.u32 %v498, 7
      %v500 = vsub.s32 1, %v499
      %v501 = vrot.slane %v364, %v500
      %vm502 = vcmp.eq.s32.totalorder %v400, %v497
      %vm503 = vcmp.eq.s32.totalorder %v400, %v501
      %vm504 = vcmp.eq.s32.totalorder %v403, %v497
      %vm505 = vcmp.eq.s32.totalorder %v403, %v501
      %vm506 = vcmp.eq.s32.totalorder %v406, %v497
      %vm507 = vcmp.eq.s32.totalorder %v406, %v501
      %vm508 = vcmp.eq.s32.totalorder %v409, %v497
      %vm509 = vcmp.eq.s32.totalorder %v409, %v501
      %vm510 = vcmp.eq.s32.totalorder %v412, %v497
      %vm511 = vcmp.eq.s32.totalorder %v412, %v501
      %vm512 = vcmp.eq.s32.totalorder %v415, %v497
      %vm513 = vcmp.eq.s32.totalorder %v415, %v501
      %vm514 = vcmp.eq.s32.totalorder %v418, %v497
      %vm515 = vcmp.eq.s32.totalorder %v418, %v501
      %vm516 = vcmp.eq.s32.totalorder %v421, %v497
      %vm517 = vcmp.eq.s32.totalorder %v421, %v501
      %vm518 = vcmp.eq.s32.totalorder %v424, %v497
      %vm519 = vcmp.eq.s32.totalorder %v424, %v501
      %vm520 = vcmp.eq.s32.totalorder %v427, %v497
      %vm521 = vcmp.eq.s32.totalorder %v427, %v501
      %vm522 = vcmp.eq.s32.totalorder %v430, %v497
      %vm523 = vcmp.eq.s32.totalorder %v430, %v501
      %vm524 = vcmp.eq.s32.totalorder %v433, %v497
      %vm525 = vcmp.eq.s32.totalorder %v433, %v501
      %vm526 = vcmp.eq.s32.totalorder %v436, %v497
      %vm527 = vcmp.eq.s32.totalorder %v436, %v501
      %vm528 = vcmp.eq.s32.totalorder %v439, %v497
      %vm529 = vcmp.eq.s32.totalorder %v439, %v501
      %vm530 = vcmp.eq.s32.totalorder %v442, %v497
      %vm531 = vcmp.eq.s32.totalorder %v442, %v501
      %vm532 = vcmp.eq.s32.totalorder %v445, %v497
      %vm533 = vcmp.eq.s32.totalorder %v445, %v501
      %vm534 = vcmp.eq.s32.totalorder %v448, %v497
      %vm535 = vcmp.eq.s32.totalorder %v448, %v501
      %vm536 = vcmp.eq.s32.totalorder %v451, %v497
      %vm537 = vcmp.eq.s32.totalorder %v451, %v501
      %vm538 = vcmp.eq.s32.totalorder %v454, %v497
      %vm539 = vcmp.eq.s32.totalorder %v454, %v501
      %vm540 = vcmp.eq.s32.totalorder %v457, %v497
      %vm541 = vcmp.eq.s32.totalorder %v457, %v501
      %vm542 = vcmp.eq.s32.totalorder %v460, %v497
      %vm543 = vcmp.eq.s32.totalorder %v460, %v501
      %vm544 = vcmp.eq.s32.totalorder %v463, %v497
      %vm545 = vcmp.eq.s32.totalorder %v463, %v501
      %vm546 = vcmp.eq.s32.totalorder %v466, %v497
      %vm547 = vcmp.eq.s32.totalorder %v466, %v501
      %vm548 = vcmp.eq.s32.totalorder %v469, %v497
      %vm549 = vcmp.eq.s32.totalorder %v469, %v501
      %vm550 = vcmp.eq.s32.totalorder %v472, %v497
      %vm551 = vcmp.eq.s32.totalorder %v472, %v501
      %vm552 = vcmp.eq.s32.totalorder %v475, %v497
      %vm553 = vcmp.eq.s32.totalorder %v475, %v501
      %vm554 = vcmp.eq.s32.totalorder %v478, %v497
      %vm555 = vcmp.eq.s32.totalorder %v478, %v501
      %vm556 = vcmp.eq.s32.totalorder %v481, %v497
      %vm557 = vcmp.eq.s32.totalorder %v481, %v501
      %vm558 = vcmp.eq.s32.totalorder %v484, %v497
      %vm559 = vcmp.eq.s32.totalorder %v484, %v501
      %vm560 = vcmp.eq.s32.totalorder %v487, %v497
      %vm561 = vcmp.eq.s32.totalorder %v487, %v501
      %vm562 = vcmp.eq.s32.totalorder %v490, %v497
      %vm563 = vcmp.eq.s32.totalorder %v490, %v501
      %vm564 = vcmp.eq.s32.totalorder %v493, %v497
      %vm565 = vcmp.eq.s32.totalorder %v493, %v501
      %v566 = vsel %vm502, 0.0, -1e+09
      %v567 = vsel %vm503, 0.0, -1e+09
      %v568 = vsel %vm504, 0.0, -1e+09
      %v569 = vsel %vm505, 0.0, -1e+09
      %v570 = vsel %vm506, 0.0, -1e+09
      %v571 = vsel %vm507, 0.0, -1e+09
      %v572 = vsel %vm508, 0.0, -1e+09
      %v573 = vsel %vm509, 0.0, -1e+09
      %v574 = vsel %vm510, 0.0, -1e+09
      %v575 = vsel %vm511, 0.0, -1e+09
      %v576 = vsel %vm512, 0.0, -1e+09
      %v577 = vsel %vm513, 0.0, -1e+09
      %v578 = vsel %vm514, 0.0, -1e+09
      %v579 = vsel %vm515, 0.0, -1e+09
      %v580 = vsel %vm516, 0.0, -1e+09
      %v581 = vsel %vm517, 0.0, -1e+09
      %v582 = vsel %vm518, 0.0, -1e+09
      %v583 = vsel %vm519, 0.0, -1e+09
      %v584 = vsel %vm520, 0.0, -1e+09
      %v585 = vsel %vm521, 0.0, -1e+09
      %v586 = vsel %vm522, 0.0, -1e+09
      %v587 = vsel %vm523, 0.0, -1e+09
      %v588 = vsel %vm524, 0.0, -1e+09
      %v589 = vsel %vm525, 0.0, -1e+09
      %v590 = vsel %vm526, 0.0, -1e+09
      %v591 = vsel %vm527, 0.0, -1e+09
      %v592 = vsel %vm528, 0.0, -1e+09
      %v593 = vsel %vm529, 0.0, -1e+09
      %v594 = vsel %vm530, 0.0, -1e+09
      %v595 = vsel %vm531, 0.0, -1e+09
      %v596 = vsel %vm532, 0.0, -1e+09
      %v597 = vsel %vm533, 0.0, -1e+09
      %v598 = vsel %vm534, 0.0, -1e+09
      %v599 = vsel %vm535, 0.0, -1e+09
      %v600 = vsel %vm536, 0.0, -1e+09
      %v601 = vsel %vm537, 0.0, -1e+09
      %v602 = vsel %vm538, 0.0, -1e+09
      %v603 = vsel %vm539, 0.0, -1e+09
      %v604 = vsel %vm540, 0.0, -1e+09
      %v605 = vsel %vm541, 0.0, -1e+09
      %v606 = vsel %vm542, 0.0, -1e+09
      %v607 = vsel %vm543, 0.0, -1e+09
      %v608 = vsel %vm544, 0.0, -1e+09
      %v609 = vsel %vm545, 0.0, -1e+09
      %v610 = vsel %vm546, 0.0, -1e+09
      %v611 = vsel %vm547, 0.0, -1e+09
      %v612 = vsel %vm548, 0.0, -1e+09
      %v613 = vsel %vm549, 0.0, -1e+09
      %v614 = vsel %vm550, 0.0, -1e+09
      %v615 = vsel %vm551, 0.0, -1e+09
      %v616 = vsel %vm552, 0.0, -1e+09
      %v617 = vsel %vm553, 0.0, -1e+09
      %v618 = vsel %vm554, 0.0, -1e+09
      %v619 = vsel %vm555, 0.0, -1e+09
      %v620 = vsel %vm556, 0.0, -1e+09
      %v621 = vsel %vm557, 0.0, -1e+09
      %v622 = vsel %vm558, 0.0, -1e+09
      %v623 = vsel %vm559, 0.0, -1e+09
      %v624 = vsel %vm560, 0.0, -1e+09
      %v625 = vsel %vm561, 0.0, -1e+09
      %v626 = vsel %vm562, 0.0, -1e+09
      %v627 = vsel %vm563, 0.0, -1e+09
      %v628 = vsel %vm564, 0.0, -1e+09
      %v629 = vsel %vm565, 0.0, -1e+09
      %v630 = vld [vmem:[%s3] sm:$0xf]
      %v631 = vld [vmem:[%s3 + $0x4] sm:$0xf]
      %633 = vrot.lane.b32.xlu0 %v363, 17
      %v634 = vpop.permute.xlu0 %633
      %637 = vrot.lane.b32.xlu0 %v362, 17
      %v638 = vpop.permute.xlu0 %637
      %vm639 = vcmask 138240
      %v640 = vsel %vm639, %v638, %v634
      %v643 = vsel %vm639, %v634, %v638
      %644 = vrot.lane.b32.xlu0 %v363, 16
      %v645 = vpop.permute.xlu0 %644
      %647 = vrot.lane.b32.xlu0 %v362, 16
      %v648 = vpop.permute.xlu0 %647
      %vm649 = vcmask 130048
      %v650 = vsel %vm649, %v648, %v645
      %v653 = vsel %vm649, %v645, %v648
      %654 = vrot.lane.b32.xlu0 %v363, 15
      %v655 = vpop.permute.xlu0 %654
      %657 = vrot.lane.b32.xlu0 %v362, 15
      %v658 = vpop.permute.xlu0 %657
      %vm659 = vcmask 121856
      %v660 = vsel %vm659, %v658, %v655
      %v663 = vsel %vm659, %v655, %v658
      %664 = vrot.lane.b32.xlu0 %v363, 1
      %v665 = vpop.permute.xlu0 %664
      %667 = vrot.lane.b32.xlu0 %v362, 1
      %v668 = vpop.permute.xlu0 %667
      %vm669 = vcmask 7168
      %v670 = vsel %vm669, %v668, %v665
      %v673 = vsel %vm669, %v665, %v668
      %674 = vrot.lane.b32.xlu0 %v362, 127
      %v675 = vpop.permute.xlu0 %674
      %676 = vrot.lane.b32.xlu0 %v363, 127
      %v677 = vpop.permute.xlu0 %676
      %vm678 = vcmask 1039360
      %v679 = vsel %vm678, %v675, %v677
      %v683 = vsel %vm678, %v677, %v675
      %684 = vrot.lane.b32.xlu0 %v362, 113
      %v685 = vpop.permute.xlu0 %684
      %686 = vrot.lane.b32.xlu0 %v363, 113
      %v687 = vpop.permute.xlu0 %686
      %vm688 = vcmask 924672
      %v689 = vsel %vm688, %v685, %v687
      %v693 = vsel %vm688, %v687, %v685
      %694 = vrot.lane.b32.xlu0 %v362, 112
      %v695 = vpop.permute.xlu0 %694
      %696 = vrot.lane.b32.xlu0 %v363, 112
      %v697 = vpop.permute.xlu0 %696
      %vm698 = vcmask 916480
      %v699 = vsel %vm698, %v695, %v697
      %v703 = vsel %vm698, %v697, %v695
      %704 = vrot.lane.b32.xlu0 %v362, 111
      %v705 = vpop.permute.xlu0 %704
      %706 = vrot.lane.b32.xlu0 %v363, 111
      %v707 = vpop.permute.xlu0 %706
      %vm708 = vcmask 908288
      %v709 = vsel %vm708, %v705, %v707
      %v713 = vsel %vm708, %v707, %v705
      %v714 = vpack.c.bf16 %v653, %v643
      %v715 = vpack.c.bf16 %v650, %v640
      %v716 = vpack.c.bf16 %v673, %v663
      %v717 = vpack.c.bf16 %v670, %v660
      %v718 = vpack.c.bf16 %v679, %v362
      %v719 = vpack.c.bf16 %v683, %v363
      %v720 = vpack.c.bf16 %v699, %v689
      %v721 = vpack.c.bf16 %v703, %v693
      %v722 = vpack.c.bf16 %v709, %v709
      %v723 = vpack.c.bf16 %v713, %v713
      %v724 = vld [vmem:[%s4] sm:$0xff]
      %v725 = vld [vmem:[%s4 + $0x8] sm:$0xff]
      %727 = vset.pattern.permute.xlu0 0
      %728 = vperm.xlu0 %727, %v724
      %v729 = vpop.permute.xlu0 %728
      %732 = vset.pattern.permute.xlu0 0
      %733 = vperm.xlu0 %732, %v725
      %v734 = vpop.permute.xlu0 %733
      %v738 = vunpack.c.l.b16 %v630
      %v739 = vunpack.c.l.b16 %v631
      %v740 = vpack.c.b16 %v739, %v738
      %vm741 = vcmask 588800
      %v743 = vsel %vm741, %v740, 0
      %vm745 = vcmask 1043456
      %v747 = vsel %vm745, %v722, 0
      %v750 = vsel %vm745, %v723, 0
      %752 = vmatprep.subr.bf16.mxu0 %v715
      %753 = vmatpush1.bf16.msra.mxu0 %v714
      %754 = vmatprep.subr.bf16.mxu0 %v717
      %755 = vmatpush1.bf16.msra.mxu0 %v716
      %756 = vmatprep.subr.bf16.mxu0 %v719
      %757 = vmatpush1.bf16.msra.mxu0 %v718
      %758 = vmatprep.subr.bf16.mxu0 %v721
      %759 = vmatpush1.bf16.msra.mxu0 %v720
      %760 = vmatprep.subr.bf16.mxu0 %v750
      %761 = vmatpush1.bf16.msra.mxu0 %v747
      %762 = vmatprep.subr.bf16.mxu0 0
      %763 = vmatpush1.bf16.msra.mxu0 0
      %764 = vmatprep.subr.bf16.mxu0 0
      %765 = vmatpush1.bf16.msra.mxu0 0
      %766 = vmatprep.subr.bf16.mxu0 0
      %767 = vmatpush1.bf16.msra.mxu0 0
      %768 = vmatprep.subr.bf16.mxu0 0
      %769 = vmatpush1.bf16.msra.mxu0 0
      %770 = vmatprep.subr.bf16.mxu0 0
      %771 = vmatpush1.bf16.msra.mxu0 0
      %772 = vmatprep.subr.bf16.mxu0 0
      %773 = vmatpush1.bf16.msra.mxu0 0
      %774 = vmatprep.subr.bf16.mxu0 0
      %775 = vmatpush1.bf16.msra.mxu0 0
      %776 = vmatprep.subr.bf16.mxu0 0
      %777 = vmatpush1.bf16.msra.mxu0 0
      %778 = vmatprep.subr.bf16.mxu0 0
      %779 = vmatpush1.bf16.msra.mxu0 0
      %780 = vmatprep.subr.bf16.mxu0 0
      %781 = vmatpush1.bf16.msra.mxu0 0
      %782 = vmatprep.subr.bf16.mxu0 0
      %783 = vmatpush1.bf16.msra.mxu0 0
      %784 = vmatprep.mubr.bf16.mxu0 0
      %785 = vmatmul.mubr.bf16.gmra.mrb[0].mxu0 %v743
      %v786 = vpop.f32.mrb[0].mxu0
      %v787 = vadd.f32 %v729, %v786
      %v788 = vpop.f32.mrb[0].mxu0
      %v789 = vadd.f32 %v729, %v788
      %v790 = vpop.f32.mrb[0].mxu0
      %v791 = vadd.f32 %v734, %v790
      %v792 = vpop.f32.mrb[0].mxu0
      %v793 = vadd.f32 %v734, %v792
      %794 = vdwg.mxu0
      %v795 = vmax.f32 %v787, 0.0
      %v796 = vmax.f32 %v789, 0.0
      %v797 = vmax.f32 %v791, 0.0
      %v798 = vmax.f32 %v793, 0.0
      %v799 = vsel %vm397, 1, 0
      %v800 = vlaneseq
      %v801 = vshrl.u32 %v800, 7
      %v802 = vsub.s32 0, %v801
      %v803 = vrot.slane %v799, %v802
      %v804 = vlaneseq
      %v805 = vshrl.u32 %v804, 7
      %v806 = vsub.s32 1, %v805
      %v807 = vrot.slane %v799, %v806
      %vm808 = vcmp.eq.s32.totalorder %v803, 1
      %vm809 = vcmp.eq.s32.totalorder %v807, 1
      %v810 = vsel %vm808, %v795, 0.0
      %v811 = vsel %vm809, %v796, 0.0
      %v812 = vsel %vm808, %v797, 0.0
      %v813 = vsel %vm809, %v798, 0.0
      %v814 = vld [vmem:[%s5] sm:$0xff]
      %v815 = vld [vmem:[%s5 + $0x8] sm:$0xff]
      %818 = vrot.lane.b32.xlu0 %v811, 17
      %v819 = vpop.permute.xlu0 %818
      %820 = vrot.lane.b32.xlu0 %v813, 17
      %v821 = vpop.permute.xlu0 %820
      %826 = vrot.lane.b32.xlu0 %v810, 17
      %v827 = vpop.permute.xlu0 %826
      %828 = vrot.lane.b32.xlu0 %v812, 17
      %v829 = vpop.permute.xlu0 %828
      %v830 = vsel %vm639, %v827, %v819
      %v831 = vsel %vm639, %v829, %v821
      %v836 = vsel %vm639, %v819, %v827
      %v837 = vsel %vm639, %v821, %v829
      %838 = vrot.lane.b32.xlu0 %v811, 16
      %v839 = vpop.permute.xlu0 %838
      %840 = vrot.lane.b32.xlu0 %v813, 16
      %v841 = vpop.permute.xlu0 %840
      %844 = vrot.lane.b32.xlu0 %v810, 16
      %v845 = vpop.permute.xlu0 %844
      %846 = vrot.lane.b32.xlu0 %v812, 16
      %v847 = vpop.permute.xlu0 %846
      %v848 = vsel %vm649, %v845, %v839
      %v849 = vsel %vm649, %v847, %v841
      %v854 = vsel %vm649, %v839, %v845
      %v855 = vsel %vm649, %v841, %v847
      %856 = vrot.lane.b32.xlu0 %v811, 15
      %v857 = vpop.permute.xlu0 %856
      %858 = vrot.lane.b32.xlu0 %v813, 15
      %v859 = vpop.permute.xlu0 %858
      %862 = vrot.lane.b32.xlu0 %v810, 15
      %v863 = vpop.permute.xlu0 %862
      %864 = vrot.lane.b32.xlu0 %v812, 15
      %v865 = vpop.permute.xlu0 %864
      %v866 = vsel %vm659, %v863, %v857
      %v867 = vsel %vm659, %v865, %v859
      %v872 = vsel %vm659, %v857, %v863
      %v873 = vsel %vm659, %v859, %v865
      %874 = vrot.lane.b32.xlu0 %v811, 1
      %v875 = vpop.permute.xlu0 %874
      %876 = vrot.lane.b32.xlu0 %v813, 1
      %v877 = vpop.permute.xlu0 %876
      %880 = vrot.lane.b32.xlu0 %v810, 1
      %v881 = vpop.permute.xlu0 %880
      %882 = vrot.lane.b32.xlu0 %v812, 1
      %v883 = vpop.permute.xlu0 %882
      %v884 = vsel %vm669, %v881, %v875
      %v885 = vsel %vm669, %v883, %v877
      %v890 = vsel %vm669, %v875, %v881
      %v891 = vsel %vm669, %v877, %v883
      %892 = vrot.lane.b32.xlu0 %v810, 127
      %v893 = vpop.permute.xlu0 %892
      %894 = vrot.lane.b32.xlu0 %v811, 127
      %v895 = vpop.permute.xlu0 %894
      %896 = vrot.lane.b32.xlu0 %v812, 127
      %v897 = vpop.permute.xlu0 %896
      %898 = vrot.lane.b32.xlu0 %v813, 127
      %v899 = vpop.permute.xlu0 %898
      %v900 = vsel %vm678, %v893, %v895
      %v901 = vsel %vm678, %v897, %v899
      %v908 = vsel %vm678, %v895, %v893
      %v909 = vsel %vm678, %v899, %v897
      %910 = vrot.lane.b32.xlu0 %v810, 113
      %v911 = vpop.permute.xlu0 %910
      %912 = vrot.lane.b32.xlu0 %v811, 113
      %v913 = vpop.permute.xlu0 %912
      %914 = vrot.lane.b32.xlu0 %v812, 113
      %v915 = vpop.permute.xlu0 %914
      %916 = vrot.lane.b32.xlu0 %v813, 113
      %v917 = vpop.permute.xlu0 %916
      %v918 = vsel %vm688, %v911, %v913
      %v919 = vsel %vm688, %v915, %v917
      %v926 = vsel %vm688, %v913, %v911
      %v927 = vsel %vm688, %v917, %v915
      %928 = vrot.lane.b32.xlu0 %v810, 112
      %v929 = vpop.permute.xlu0 %928
      %930 = vrot.lane.b32.xlu0 %v811, 112
      %v931 = vpop.permute.xlu0 %930
      %932 = vrot.lane.b32.xlu0 %v812, 112
      %v933 = vpop.permute.xlu0 %932
      %934 = vrot.lane.b32.xlu0 %v813, 112
      %v935 = vpop.permute.xlu0 %934
      %v936 = vsel %vm698, %v929, %v931
      %v937 = vsel %vm698, %v933, %v935
      %v944 = vsel %vm698, %v931, %v929
      %v945 = vsel %vm698, %v935, %v933
      %946 = vrot.lane.b32.xlu0 %v810, 111
      %v947 = vpop.permute.xlu0 %946
      %948 = vrot.lane.b32.xlu0 %v811, 111
      %v949 = vpop.permute.xlu0 %948
      %950 = vrot.lane.b32.xlu0 %v812, 111
      %v951 = vpop.permute.xlu0 %950
      %952 = vrot.lane.b32.xlu0 %v813, 111
      %v953 = vpop.permute.xlu0 %952
      %v954 = vsel %vm708, %v947, %v949
      %v955 = vsel %vm708, %v951, %v953
      %v962 = vsel %vm708, %v949, %v947
      %v963 = vsel %vm708, %v953, %v951
      %v964 = vpack.c.bf16 %v837, %v836
      %v965 = vpack.c.bf16 %v831, %v830
      %v966 = vpack.c.bf16 %v855, %v854
      %v967 = vpack.c.bf16 %v849, %v848
      %v968 = vpack.c.bf16 %v873, %v872
      %v969 = vpack.c.bf16 %v867, %v866
      %v970 = vpack.c.bf16 %v891, %v890
      %v971 = vpack.c.bf16 %v885, %v884
      %v972 = vpack.c.bf16 %v812, %v810
      %v973 = vpack.c.bf16 %v813, %v811
      %v974 = vpack.c.bf16 %v901, %v900
      %v975 = vpack.c.bf16 %v909, %v908
      %v976 = vpack.c.bf16 %v919, %v918
      %v977 = vpack.c.bf16 %v927, %v926
      %v978 = vpack.c.bf16 %v937, %v936
      %v979 = vpack.c.bf16 %v945, %v944
      %v980 = vpack.c.bf16 %v955, %v954
      %v981 = vpack.c.bf16 %v963, %v962
      %v982 = vpack.c.bf16 %v362, %v362
      %v983 = vpack.c.bf16 %v363, %v363
      %v984 = vld [vmem:[%s6] sm:$0xff]
      %v985 = vld [vmem:[%s6 + $0x8] sm:$0xff]
      %987 = vset.pattern.permute.xlu0 0
      %988 = vperm.xlu0 %987, %v984
      %v989 = vpop.permute.xlu0 %988
      %992 = vset.pattern.permute.xlu0 0
      %993 = vperm.xlu0 %992, %v985
      %v994 = vpop.permute.xlu0 %993
      %v998 = vunpack.c.l.b16 %v814
      %v999 = vunpack.c.h.b16 %v814
      %v1000 = vunpack.c.l.b16 %v815
      %v1001 = vunpack.c.h.b16 %v815
      %v1002 = vpack.c.b16 %v1000, %v998
      %v1003 = vpack.c.b16 %v1001, %v999
      %vm1005 = vcmask 195584
      %v1007 = vsel %vm1005, %v1003, 0
      %v1010 = vsel %vm745, %v982, 0
      %v1013 = vsel %vm745, %v983, 0
      %1015 = vmatprep.subr.bf16.mxu0 %v965
      %1016 = vmatpush1.bf16.msra.mxu0 %v964
      %1017 = vmatprep.subr.bf16.mxu0 %v967
      %1018 = vmatpush1.bf16.msra.mxu0 %v966
      %1019 = vmatprep.subr.bf16.mxu0 %v969
      %1020 = vmatpush1.bf16.msra.mxu0 %v968
      %1021 = vmatprep.subr.bf16.mxu0 %v971
      %1022 = vmatpush1.bf16.msra.mxu0 %v970
      %1023 = vmatprep.subr.bf16.mxu0 %v973
      %1024 = vmatpush1.bf16.msra.mxu0 %v972
      %1025 = vmatprep.subr.bf16.mxu0 %v975
      %1026 = vmatpush1.bf16.msra.mxu0 %v974
      %1027 = vmatprep.subr.bf16.mxu0 %v977
      %1028 = vmatpush1.bf16.msra.mxu0 %v976
      %1029 = vmatprep.subr.bf16.mxu0 %v979
      %1030 = vmatpush1.bf16.msra.mxu0 %v978
      %1031 = vmatprep.subr.bf16.mxu0 %v981
      %1032 = vmatpush1.bf16.msra.mxu0 %v980
      %1033 = vmatprep.subr.bf16.mxu0 %v1013
      %1034 = vmatpush1.bf16.msra.mxu0 %v1010
      %1035 = vmatprep.subr.bf16.mxu0 0
      %1036 = vmatpush1.bf16.msra.mxu0 0
      %1037 = vmatprep.subr.bf16.mxu0 0
      %1038 = vmatpush1.bf16.msra.mxu0 0
      %1039 = vmatprep.subr.bf16.mxu0 0
      %1040 = vmatpush1.bf16.msra.mxu0 0
      %1041 = vmatprep.subr.bf16.mxu0 0
      %1042 = vmatpush1.bf16.msra.mxu0 0
      %1043 = vmatprep.subr.bf16.mxu0 0
      %1044 = vmatpush1.bf16.msra.mxu0 0
      %1045 = vmatprep.subr.bf16.mxu0 0
      %1046 = vmatpush1.bf16.msra.mxu0 0
      %1047 = vmatprep.mubr.bf16.mxu0 %v1007
      %1048 = vmatmul.mubr.bf16.gmra.mrb[0].mxu0 %v1002
      %v1049 = vpop.f32.mrb[0].mxu0
      %v1050 = vadd.f32 %v989, %v1049
      %v1051 = vpop.f32.mrb[0].mxu0
      %v1052 = vadd.f32 %v989, %v1051
      %v1053 = vpop.f32.mrb[0].mxu0
      %v1054 = vadd.f32 %v994, %v1053
      %v1055 = vpop.f32.mrb[0].mxu0
      %v1056 = vadd.f32 %v994, %v1055
      %1057 = vdwg.mxu0
      %v1058 = vmax.f32 %v1050, 0.0
      %v1059 = vmax.f32 %v1052, 0.0
      %v1060 = vmax.f32 %v1054, 0.0
      %v1061 = vmax.f32 %v1056, 0.0
      %v1062 = vld [vmem:[%s7] sm:$0xf]
      %v1063 = vld [vmem:[%s7 + $0x4] sm:$0xf]
      %v1064 = vld [vmem:[%s7 + $0x8] sm:$0xf]
      %v1065 = vld [vmem:[%s7 + $0xc] sm:$0xf]
      %v1066 = vld [vmem:[%s7 + $0x10] sm:$0xf]
      %v1067 = vld [vmem:[%s7 + $0x14] sm:$0xf]
      %v1068 = vld [vmem:[%s7 + $0x18] sm:$0xf]
      %v1069 = vld [vmem:[%s7 + $0x1c] sm:$0xf]
      %v1070 = vpack.c.bf16 %v1060, %v1058
      %v1071 = vpack.c.bf16 %v1061, %v1059
      %v1072 = vld [vmem:[%s8] sm:$0xff]
      %v1073 = vld [vmem:[%s8 + $0x8] sm:$0xff]
      %v1074 = vld [vmem:[%s8 + $0x10] sm:$0xff]
      %v1075 = vld [vmem:[%s8 + $0x18] sm:$0xff]
      %v1076 = vld [vmem:[%s8 + $0x20] sm:$0xff]
      %v1077 = vld [vmem:[%s8 + $0x28] sm:$0xff]
      %v1078 = vld [vmem:[%s8 + $0x30] sm:$0xff]
      %v1079 = vld [vmem:[%s8 + $0x38] sm:$0xff]
      %1081 = vset.pattern.permute.xlu0 0
      %1082 = vperm.xlu0 %1081, %v1072
      %v1083 = vpop.permute.xlu0 %1082
      %1086 = vset.pattern.permute.xlu0 0
      %1087 = vperm.xlu0 %1086, %v1073
      %v1088 = vpop.permute.xlu0 %1087
      %1091 = vset.pattern.permute.xlu0 0
      %1092 = vperm.xlu0 %1091, %v1074
      %v1093 = vpop.permute.xlu0 %1092
      %1096 = vset.pattern.permute.xlu0 0
      %1097 = vperm.xlu0 %1096, %v1075
      %v1098 = vpop.permute.xlu0 %1097
      %1101 = vset.pattern.permute.xlu0 0
      %1102 = vperm.xlu0 %1101, %v1076
      %v1103 = vpop.permute.xlu0 %1102
      %1106 = vset.pattern.permute.xlu0 0
      %1107 = vperm.xlu0 %1106, %v1077
      %v1108 = vpop.permute.xlu0 %1107
      %1111 = vset.pattern.permute.xlu0 0
      %1112 = vperm.xlu0 %1111, %v1078
      %v1113 = vpop.permute.xlu0 %1112
      %1116 = vset.pattern.permute.xlu0 0
      %1117 = vperm.xlu0 %1116, %v1079
      %v1118 = vpop.permute.xlu0 %1117
      %v1128 = vunpack.c.l.b16 %v1062
      %v1129 = vunpack.c.l.b16 %v1063
      %v1130 = vunpack.c.l.b16 %v1064
      %v1131 = vunpack.c.l.b16 %v1065
      %v1132 = vunpack.c.l.b16 %v1066
      %v1133 = vunpack.c.l.b16 %v1067
      %v1134 = vunpack.c.l.b16 %v1068
      %v1135 = vunpack.c.l.b16 %v1069
      %v1136 = vpack.c.b16 %v1129, %v1128
      %v1137 = vpack.c.b16 %v1131, %v1130
      %v1138 = vpack.c.b16 %v1133, %v1132
      %v1139 = vpack.c.b16 %v1135, %v1134
      %v1141 = vsel %vm649, %v1136, 0
      %v1144 = vsel %vm649, %v1137, 0
      %v1147 = vsel %vm649, %v1138, 0
      %v1150 = vsel %vm649, %v1139, 0
      %1152 = vmatprep.subr.bf16.mxu0 %v1071
      %1153 = vmatpush1.bf16.msra.mxu0 %v1070
      %1154 = vmatprep.subr.bf16.mxu0 0
      %1155 = vmatpush1.bf16.msra.mxu0 0
      %1156 = vmatprep.subr.bf16.mxu0 0
      %1157 = vmatpush1.bf16.msra.mxu0 0
      %1158 = vmatprep.subr.bf16.mxu0 0
      %1159 = vmatpush1.bf16.msra.mxu0 0
      %1160 = vmatprep.subr.bf16.mxu0 0
      %1161 = vmatpush1.bf16.msra.mxu0 0
      %1162 = vmatprep.subr.bf16.mxu0 0
      %1163 = vmatpush1.bf16.msra.mxu0 0
      %1164 = vmatprep.subr.bf16.mxu0 0
      %1165 = vmatpush1.bf16.msra.mxu0 0
      %1166 = vmatprep.subr.bf16.mxu0 0
      %1167 = vmatpush1.bf16.msra.mxu0 0
      %1168 = vmatprep.subr.bf16.mxu0 0
      %1169 = vmatpush1.bf16.msra.mxu0 0
      %1170 = vmatprep.subr.bf16.mxu0 0
      %1171 = vmatpush1.bf16.msra.mxu0 0
      %1172 = vmatprep.subr.bf16.mxu0 0
      %1173 = vmatpush1.bf16.msra.mxu0 0
      %1174 = vmatprep.subr.bf16.mxu0 0
      %1175 = vmatpush1.bf16.msra.mxu0 0
      %1176 = vmatprep.subr.bf16.mxu0 0
      %1177 = vmatpush1.bf16.msra.mxu0 0
      %1178 = vmatprep.subr.bf16.mxu0 0
      %1179 = vmatpush1.bf16.msra.mxu0 0
      %1180 = vmatprep.subr.bf16.mxu0 0
      %1181 = vmatpush1.bf16.msra.mxu0 0
      %1182 = vmatprep.subr.bf16.mxu0 0
      %1183 = vmatpush1.bf16.msra.mxu0 0
      %1184 = vmatprep.mubr.bf16.mxu0 0
      %1185 = vmatmul.mubr.bf16.gmra.mrb[0].mxu0 %v1141
      %v1186 = vpop.f32.mrb[0].mxu0
      %v1187 = vadd.f32 %v1083, %v1186
      %v1188 = vpop.f32.mrb[0].mxu0
      %v1189 = vadd.f32 %v1083, %v1188
      %v1190 = vpop.f32.mrb[0].mxu0
      %v1191 = vadd.f32 %v1088, %v1190
      %v1192 = vpop.f32.mrb[0].mxu0
      %v1193 = vadd.f32 %v1088, %v1192
      %1194 = vmatprep.mubr.bf16.mxu0 0
      %1195 = vmatmul.mubr.bf16.gmra.mrb[0].mxu0 %v1144
      %v1196 = vpop.f32.mrb[0].mxu0
      %v1197 = vadd.f32 %v1093, %v1196
      %v1198 = vpop.f32.mrb[0].mxu0
      %v1199 = vadd.f32 %v1093, %v1198
      %v1200 = vpop.f32.mrb[0].mxu0
      %v1201 = vadd.f32 %v1098, %v1200
      %v1202 = vpop.f32.mrb[0].mxu0
      %v1203 = vadd.f32 %v1098, %v1202
      %1204 = vmatprep.mubr.bf16.mxu0 0
      %1205 = vmatmul.mubr.bf16.gmra.mrb[0].mxu0 %v1147
      %v1206 = vpop.f32.mrb[0].mxu0
      %v1207 = vadd.f32 %v1103, %v1206
      %v1208 = vpop.f32.mrb[0].mxu0
      %v1209 = vadd.f32 %v1103, %v1208
      %v1210 = vpop.f32.mrb[0].mxu0
      %v1211 = vadd.f32 %v1108, %v1210
      %v1212 = vpop.f32.mrb[0].mxu0
      %v1213 = vadd.f32 %v1108, %v1212
      %1214 = vmatprep.mubr.bf16.mxu0 0
      %1215 = vmatmul.mubr.bf16.gmra.mrb[0].mxu0 %v1150
      %v1216 = vpop.f32.mrb[0].mxu0
      %v1217 = vadd.f32 %v1113, %v1216
      %v1218 = vpop.f32.mrb[0].mxu0
      %v1219 = vadd.f32 %v1113, %v1218
      %v1220 = vpop.f32.mrb[0].mxu0
      %v1221 = vadd.f32 %v1118, %v1220
      %v1222 = vpop.f32.mrb[0].mxu0
      %v1223 = vadd.f32 %v1118, %v1222
      %1224 = vdwg.mxu0
      %v1225 = vpack.c.bf16 %v1187, %v1187
      %v1226 = vpack.c.bf16 %v1189, %v1189
      %v1227 = vpack.c.bf16 %v1197, %v1197
      %v1228 = vpack.c.bf16 %v1199, %v1199
      %v1229 = vpack.c.bf16 %v1211, %v1207
      %v1230 = vpack.c.bf16 %v1213, %v1209
      %1231 = vxpose.xlu0.c.b16.start [1/8] %v1227, 128
      %1232 = vxpose.xlu0.c.b16.cont [2/8] 0, 128
      %1233 = vxpose.xlu0.c.b16.cont [3/8] 0, 128
      %1234 = vxpose.xlu0.c.b16.cont [4/8] 0, 128
      %1235 = vxpose.xlu0.c.b16.cont [5/8] 0, 128
      %1236 = vxpose.xlu0.c.b16.cont [6/8] 0, 128
      %1237 = vxpose.xlu0.c.b16.cont [7/8] 0, 128
      %1238 = vxpose.xlu0.c.b16.end [8/8] 0, 128
      %v1239 = vpop.trf.xlu0
      %v1240 = vpop.trf.xlu0
      %v1241 = vpop.trf.xlu0
      %v1242 = vpop.trf.xlu0
      %v1243 = vpop.trf.xlu0
      %v1244 = vpop.trf.xlu0
      %v1245 = vpop.trf.xlu0
      %v1246 = vpop.trf.xlu0
      %1247 = vxpose.xlu0.c.b16.start [1/8] %v1228, 128
      %1248 = vxpose.xlu0.c.b16.cont [2/8] 0, 128
      %1249 = vxpose.xlu0.c.b16.cont [3/8] 0, 128
      %1250 = vxpose.xlu0.c.b16.cont [4/8] 0, 128
      %1251 = vxpose.xlu0.c.b16.cont [5/8] 0, 128
      %1252 = vxpose.xlu0.c.b16.cont [6/8] 0, 128
      %1253 = vxpose.xlu0.c.b16.cont [7/8] 0, 128
      %1254 = vxpose.xlu0.c.b16.end [8/8] 0, 128
      %v1255 = vpop.trf.xlu0
      %v1256 = vpop.trf.xlu0
      %v1257 = vpop.trf.xlu0
      %v1258 = vpop.trf.xlu0
      %v1259 = vpop.trf.xlu0
      %v1260 = vpop.trf.xlu0
      %v1261 = vpop.trf.xlu0
      %v1262 = vpop.trf.xlu0
      %vm1263 = vcmask 64512
      %v1265 = vsel %vm1263, %v1239, 0
      %v1268 = vsel %vm1263, %v1240, 0
      %v1271 = vsel %vm1263, %v1241, 0
      %v1274 = vsel %vm1263, %v1242, 0
      %v1277 = vsel %vm1263, %v1243, 0
      %v1280 = vsel %vm1263, %v1244, 0
      %v1283 = vsel %vm1263, %v1245, 0
      %v1286 = vsel %vm1263, %v1246, 0
      %v1289 = vsel %vm1263, %v1255, 0
      %v1292 = vsel %vm1263, %v1256, 0
      %v1295 = vsel %vm1263, %v1257, 0
      %v1298 = vsel %vm1263, %v1258, 0
      %v1301 = vsel %vm1263, %v1259, 0
      %v1304 = vsel %vm1263, %v1260, 0
      %v1307 = vsel %vm1263, %v1261, 0
      %v1310 = vsel %vm1263, %v1262, 0
      %v1313 = vsel %vm745, %v1225, 0
      %v1316 = vsel %vm745, %v1226, 0
      %1318 = vmatprep.subr.bf16.mxu0 %v1316
      %1319 = vmatpush1.bf16.msra.mxu0 %v1313
      %1320 = vmatprep.subr.bf16.mxu0 0
      %1321 = vmatpush1.bf16.msra.mxu0 0
      %1322 = vmatprep.subr.bf16.mxu0 0
      %1323 = vmatpush1.bf16.msra.mxu0 0
      %1324 = vmatprep.subr.bf16.mxu0 0
      %1325 = vmatpush1.bf16.msra.mxu0 0
      %1326 = vmatprep.subr.bf16.mxu0 0
      %1327 = vmatpush1.bf16.msra.mxu0 0
      %1328 = vmatprep.subr.bf16.mxu0 0
      %1329 = vmatpush1.bf16.msra.mxu0 0
      %1330 = vmatprep.subr.bf16.mxu0 0
      %1331 = vmatpush1.bf16.msra.mxu0 0
      %1332 = vmatprep.subr.bf16.mxu0 0
      %1333 = vmatpush1.bf16.msra.mxu0 0
      %1334 = vmatprep.subr.bf16.mxu0 0
      %1335 = vmatpush1.bf16.msra.mxu0 0
      %1336 = vmatprep.subr.bf16.mxu0 0
      %1337 = vmatpush1.bf16.msra.mxu0 0
      %1338 = vmatprep.subr.bf16.mxu0 0
      %1339 = vmatpush1.bf16.msra.mxu0 0
      %1340 = vmatprep.subr.bf16.mxu0 0
      %1341 = vmatpush1.bf16.msra.mxu0 0
      %1342 = vmatprep.subr.bf16.mxu0 0
      %1343 = vmatpush1.bf16.msra.mxu0 0
      %1344 = vmatprep.subr.bf16.mxu0 0
      %1345 = vmatpush1.bf16.msra.mxu0 0
      %1346 = vmatprep.subr.bf16.mxu0 0
      %1347 = vmatpush1.bf16.msra.mxu0 0
      %1348 = vmatprep.subr.bf16.mxu0 0
      %1349 = vmatpush1.bf16.msra.mxu0 0
      %1350 = vmatprep.mubr.bf16.mxu0 0
      %1351 = vmatmul.mubr.bf16.gmra.mrb[0].mxu0 %v1265
      %v1352 = vpop.f32.mrb[0].mxu0
      %v1353 = vadd.f32 %v566, %v1352
      %v1354 = vpop.f32.mrb[0].mxu0
      %v1355 = vadd.f32 %v567, %v1354
      %v1356 = vpop.f32.mrb[0].mxu0
      %v1357 = vadd.f32 %v568, %v1356
      %v1358 = vpop.f32.mrb[0].mxu0
      %v1359 = vadd.f32 %v569, %v1358
      %1360 = vmatprep.mubr.bf16.mxu0 0
      %1361 = vmatmul.mubr.bf16.gmra.mrb[0].mxu0 %v1268
      %v1362 = vpop.f32.mrb[0].mxu0
      %v1363 = vadd.f32 %v570, %v1362
      %v1364 = vpop.f32.mrb[0].mxu0
      %v1365 = vadd.f32 %v571, %v1364
      %v1366 = vpop.f32.mrb[0].mxu0
      %v1367 = vadd.f32 %v572, %v1366
      %v1368 = vpop.f32.mrb[0].mxu0
      %v1369 = vadd.f32 %v573, %v1368
      %1370 = vmatprep.mubr.bf16.mxu0 0
      %1371 = vmatmul.mubr.bf16.gmra.mrb[0].mxu0 %v1271
      %v1372 = vpop.f32.mrb[0].mxu0
      %v1373 = vadd.f32 %v574, %v1372
      %v1374 = vpop.f32.mrb[0].mxu0
      %v1375 = vadd.f32 %v575, %v1374
      %v1376 = vpop.f32.mrb[0].mxu0
      %v1377 = vadd.f32 %v576, %v1376
      %v1378 = vpop.f32.mrb[0].mxu0
      %v1379 = vadd.f32 %v577, %v1378
      %1380 = vmatprep.mubr.bf16.mxu0 0
      %1381 = vmatmul.mubr.bf16.gmra.mrb[0].mxu0 %v1274
      %v1382 = vpop.f32.mrb[0].mxu0
      %v1383 = vadd.f32 %v578, %v1382
      %v1384 = vpop.f32.mrb[0].mxu0
      %v1385 = vadd.f32 %v579, %v1384
      %v1386 = vpop.f32.mrb[0].mxu0
      %v1387 = vadd.f32 %v580, %v1386
      %v1388 = vpop.f32.mrb[0].mxu0
      %v1389 = vadd.f32 %v581, %v1388
      %1390 = vmatprep.mubr.bf16.mxu0 0
      %1391 = vmatmul.mubr.bf16.gmra.mrb[0].mxu0 %v1277
      %v1392 = vpop.f32.mrb[0].mxu0
      %v1393 = vadd.f32 %v582, %v1392
      %v1394 = vpop.f32.mrb[0].mxu0
      %v1395 = vadd.f32 %v583, %v1394
      %v1396 = vpop.f32.mrb[0].mxu0
      %v1397 = vadd.f32 %v584, %v1396
      %v1398 = vpop.f32.mrb[0].mxu0
      %v1399 = vadd.f32 %v585, %v1398
      %1400 = vmatprep.mubr.bf16.mxu0 0
      %1401 = vmatmul.mubr.bf16.gmra.mrb[0].mxu0 %v1280
      %v1402 = vpop.f32.mrb[0].mxu0
      %v1403 = vadd.f32 %v586, %v1402
      %v1404 = vpop.f32.mrb[0].mxu0
      %v1405 = vadd.f32 %v587, %v1404
      %v1406 = vpop.f32.mrb[0].mxu0
      %v1407 = vadd.f32 %v588, %v1406
      %v1408 = vpop.f32.mrb[0].mxu0
      %v1409 = vadd.f32 %v589, %v1408
      %1410 = vmatprep.mubr.bf16.mxu0 0
      %1411 = vmatmul.mubr.bf16.gmra.mrb[0].mxu0 %v1283
      %v1412 = vpop.f32.mrb[0].mxu0
      %v1413 = vadd.f32 %v590, %v1412
      %v1414 = vpop.f32.mrb[0].mxu0
      %v1415 = vadd.f32 %v591, %v1414
      %v1416 = vpop.f32.mrb[0].mxu0
      %v1417 = vadd.f32 %v592, %v1416
      %v1418 = vpop.f32.mrb[0].mxu0
      %v1419 = vadd.f32 %v593, %v1418
      %1420 = vmatprep.mubr.bf16.mxu0 0
      %1421 = vmatmul.mubr.bf16.gmra.mrb[0].mxu0 %v1286
      %v1422 = vpop.f32.mrb[0].mxu0
      %v1423 = vadd.f32 %v594, %v1422
      %v1424 = vpop.f32.mrb[0].mxu0
      %v1425 = vadd.f32 %v595, %v1424
      %v1426 = vpop.f32.mrb[0].mxu0
      %v1427 = vadd.f32 %v596, %v1426
      %v1428 = vpop.f32.mrb[0].mxu0
      %v1429 = vadd.f32 %v597, %v1428
      %1430 = vmatprep.mubr.bf16.mxu0 0
      %1431 = vmatmul.mubr.bf16.gmra.mrb[0].mxu0 %v1289
      %v1432 = vpop.f32.mrb[0].mxu0
      %v1433 = vadd.f32 %v598, %v1432
      %v1434 = vpop.f32.mrb[0].mxu0
      %v1435 = vadd.f32 %v599, %v1434
      %v1436 = vpop.f32.mrb[0].mxu0
      %v1437 = vadd.f32 %v600, %v1436
      %v1438 = vpop.f32.mrb[0].mxu0
      %v1439 = vadd.f32 %v601, %v1438
      %1440 = vmatprep.mubr.bf16.mxu0 0
      %1441 = vmatmul.mubr.bf16.gmra.mrb[0].mxu0 %v1292
      %v1442 = vpop.f32.mrb[0].mxu0
      %v1443 = vadd.f32 %v602, %v1442
      %v1444 = vpop.f32.mrb[0].mxu0
      %v1445 = vadd.f32 %v603, %v1444
      %v1446 = vpop.f32.mrb[0].mxu0
      %v1447 = vadd.f32 %v604, %v1446
      %v1448 = vpop.f32.mrb[0].mxu0
      %v1449 = vadd.f32 %v605, %v1448
      %1450 = vmatprep.mubr.bf16.mxu0 0
      %1451 = vmatmul.mubr.bf16.gmra.mrb[0].mxu0 %v1295
      %v1452 = vpop.f32.mrb[0].mxu0
      %v1453 = vadd.f32 %v606, %v1452
      %v1454 = vpop.f32.mrb[0].mxu0
      %v1455 = vadd.f32 %v607, %v1454
      %v1456 = vpop.f32.mrb[0].mxu0
      %v1457 = vadd.f32 %v608, %v1456
      %v1458 = vpop.f32.mrb[0].mxu0
      %v1459 = vadd.f32 %v609, %v1458
      %1460 = vmatprep.mubr.bf16.mxu0 0
      %1461 = vmatmul.mubr.bf16.gmra.mrb[0].mxu0 %v1298
      %v1462 = vpop.f32.mrb[0].mxu0
      %v1463 = vadd.f32 %v610, %v1462
      %v1464 = vpop.f32.mrb[0].mxu0
      %v1465 = vadd.f32 %v611, %v1464
      %v1466 = vpop.f32.mrb[0].mxu0
      %v1467 = vadd.f32 %v612, %v1466
      %v1468 = vpop.f32.mrb[0].mxu0
      %v1469 = vadd.f32 %v613, %v1468
      %1470 = vmatprep.mubr.bf16.mxu0 0
      %1471 = vmatmul.mubr.bf16.gmra.mrb[0].mxu0 %v1301
      %v1472 = vpop.f32.mrb[0].mxu0
      %v1473 = vadd.f32 %v614, %v1472
      %v1474 = vpop.f32.mrb[0].mxu0
      %v1475 = vadd.f32 %v615, %v1474
      %v1476 = vpop.f32.mrb[0].mxu0
      %v1477 = vadd.f32 %v616, %v1476
      %v1478 = vpop.f32.mrb[0].mxu0
      %v1479 = vadd.f32 %v617, %v1478
      %1480 = vmatprep.mubr.bf16.mxu0 0
      %1481 = vmatmul.mubr.bf16.gmra.mrb[0].mxu0 %v1304
      %v1482 = vpop.f32.mrb[0].mxu0
      %v1483 = vadd.f32 %v618, %v1482
      %v1484 = vpop.f32.mrb[0].mxu0
      %v1485 = vadd.f32 %v619, %v1484
      %v1486 = vpop.f32.mrb[0].mxu0
      %v1487 = vadd.f32 %v620, %v1486
      %v1488 = vpop.f32.mrb[0].mxu0
      %v1489 = vadd.f32 %v621, %v1488
      %1490 = vmatprep.mubr.bf16.mxu0 0
      %1491 = vmatmul.mubr.bf16.gmra.mrb[0].mxu0 %v1307
      %v1492 = vpop.f32.mrb[0].mxu0
      %v1493 = vadd.f32 %v622, %v1492
      %v1494 = vpop.f32.mrb[0].mxu0
      %v1495 = vadd.f32 %v623, %v1494
      %v1496 = vpop.f32.mrb[0].mxu0
      %v1497 = vadd.f32 %v624, %v1496
      %v1498 = vpop.f32.mrb[0].mxu0
      %v1499 = vadd.f32 %v625, %v1498
      %1500 = vmatprep.mubr.bf16.mxu0 0
      %1501 = vmatmul.mubr.bf16.gmra.mrb[0].mxu0 %v1310
      %v1502 = vpop.f32.mrb[0].mxu0
      %v1503 = vadd.f32 %v626, %v1502
      %v1504 = vpop.f32.mrb[0].mxu0
      %v1505 = vadd.f32 %v627, %v1504
      %v1506 = vpop.f32.mrb[0].mxu0
      %v1507 = vadd.f32 %v628, %v1506
      %v1508 = vpop.f32.mrb[0].mxu0
      %v1509 = vadd.f32 %v629, %v1508
      %1510 = vdwg.mxu0
      %v1511 = vmax.f32 %v1353, %v1363
      %v1512 = vmax.f32 %v1357, %v1367
      %v1513 = vmax.f32 %v1511, %v1373
      %v1514 = vmax.f32 %v1512, %v1377
      %v1515 = vmax.f32 %v1513, %v1383
      %v1516 = vmax.f32 %v1514, %v1387
      %v1517 = vmax.f32 %v1515, %v1393
      %v1518 = vmax.f32 %v1516, %v1397
      %v1519 = vmax.f32 %v1517, %v1403
      %v1520 = vmax.f32 %v1518, %v1407
      %v1521 = vmax.f32 %v1519, %v1413
      %v1522 = vmax.f32 %v1520, %v1417
      %v1523 = vmax.f32 %v1521, %v1423
      %v1524 = vmax.f32 %v1522, %v1427
      %v1525 = vmax.f32 %v1523, %v1433
      %v1526 = vmax.f32 %v1524, %v1437
      %v1527 = vmax.f32 %v1525, %v1443
      %v1528 = vmax.f32 %v1526, %v1447
      %v1529 = vmax.f32 %v1527, %v1453
      %v1530 = vmax.f32 %v1528, %v1457
      %v1531 = vmax.f32 %v1529, %v1463
      %v1532 = vmax.f32 %v1530, %v1467
      %v1533 = vmax.f32 %v1531, %v1473
      %v1534 = vmax.f32 %v1532, %v1477
      %v1535 = vmax.f32 %v1533, %v1483
      %v1536 = vmax.f32 %v1534, %v1487
      %v1537 = vmax.f32 %v1535, %v1493
      %v1538 = vmax.f32 %v1536, %v1497
      %v1539 = vmax.f32 %v1537, %v1503
      %v1540 = vmax.f32 %v1538, %v1507
      %v1541 = vmax.f32 %v1539, %v1540
      %v1542 = vrot.slane %v1541, 4
      %v1543 = vmax.f32 %v1541, %v1542
      %v1544 = vrot.slane %v1543, 2
      %v1545 = vmax.f32 %v1543, %v1544
      %v1546 = vrot.slane %v1545, 1
      %v1547 = vmax.f32 %v1545, %v1546
      %v1548 = vmax.f32 %v1355, %v1365
      %v1549 = vmax.f32 %v1359, %v1369
      %v1550 = vmax.f32 %v1548, %v1375
      %v1551 = vmax.f32 %v1549, %v1379
      %v1552 = vmax.f32 %v1550, %v1385
      %v1553 = vmax.f32 %v1551, %v1389
      %v1554 = vmax.f32 %v1552, %v1395
      %v1555 = vmax.f32 %v1553, %v1399
      %v1556 = vmax.f32 %v1554, %v1405
      %v1557 = vmax.f32 %v1555, %v1409
      %v1558 = vmax.f32 %v1556, %v1415
      %v1559 = vmax.f32 %v1557, %v1419
      %v1560 = vmax.f32 %v1558, %v1425
      %v1561 = vmax.f32 %v1559, %v1429
      %v1562 = vmax.f32 %v1560, %v1435
      %v1563 = vmax.f32 %v1561, %v1439
      %v1564 = vmax.f32 %v1562, %v1445
      %v1565 = vmax.f32 %v1563, %v1449
      %v1566 = vmax.f32 %v1564, %v1455
      %v1567 = vmax.f32 %v1565, %v1459
      %v1568 = vmax.f32 %v1566, %v1465
      %v1569 = vmax.f32 %v1567, %v1469
      %v1570 = vmax.f32 %v1568, %v1475
      %v1571 = vmax.f32 %v1569, %v1479
      %v1572 = vmax.f32 %v1570, %v1485
      %v1573 = vmax.f32 %v1571, %v1489
      %v1574 = vmax.f32 %v1572, %v1495
      %v1575 = vmax.f32 %v1573, %v1499
      %v1576 = vmax.f32 %v1574, %v1505
      %v1577 = vmax.f32 %v1575, %v1509
      %v1578 = vmax.f32 %v1576, %v1577
      %v1579 = vrot.slane %v1578, 4
      %v1580 = vmax.f32 %v1578, %v1579
      %v1581 = vrot.slane %v1580, 2
      %v1582 = vmax.f32 %v1580, %v1581
      %v1583 = vrot.slane %v1582, 1
      %v1584 = vmax.f32 %v1582, %v1583
      %v1585 = vsub.f32 %v1353, %v1547
      %v1586 = vsub.f32 %v1355, %v1584
      %v1587 = vsub.f32 %v1357, %v1547
      %v1588 = vsub.f32 %v1359, %v1584
      %v1589 = vsub.f32 %v1363, %v1547
      %v1590 = vsub.f32 %v1365, %v1584
      %v1591 = vsub.f32 %v1367, %v1547
      %v1592 = vsub.f32 %v1369, %v1584
      %v1593 = vsub.f32 %v1373, %v1547
      %v1594 = vsub.f32 %v1375, %v1584
      %v1595 = vsub.f32 %v1377, %v1547
      %v1596 = vsub.f32 %v1379, %v1584
      %v1597 = vsub.f32 %v1383, %v1547
      %v1598 = vsub.f32 %v1385, %v1584
      %v1599 = vsub.f32 %v1387, %v1547
      %v1600 = vsub.f32 %v1389, %v1584
      %v1601 = vsub.f32 %v1393, %v1547
      %v1602 = vsub.f32 %v1395, %v1584
      %v1603 = vsub.f32 %v1397, %v1547
      %v1604 = vsub.f32 %v1399, %v1584
      %v1605 = vsub.f32 %v1403, %v1547
      %v1606 = vsub.f32 %v1405, %v1584
      %v1607 = vsub.f32 %v1407, %v1547
      %v1608 = vsub.f32 %v1409, %v1584
      %v1609 = vsub.f32 %v1413, %v1547
      %v1610 = vsub.f32 %v1415, %v1584
      %v1611 = vsub.f32 %v1417, %v1547
      %v1612 = vsub.f32 %v1419, %v1584
      %v1613 = vsub.f32 %v1423, %v1547
      %v1614 = vsub.f32 %v1425, %v1584
      %v1615 = vsub.f32 %v1427, %v1547
      %v1616 = vsub.f32 %v1429, %v1584
      %v1617 = vsub.f32 %v1433, %v1547
      %v1618 = vsub.f32 %v1435, %v1584
      %v1619 = vsub.f32 %v1437, %v1547
      %v1620 = vsub.f32 %v1439, %v1584
      %v1621 = vsub.f32 %v1443, %v1547
      %v1622 = vsub.f32 %v1445, %v1584
      %v1623 = vsub.f32 %v1447, %v1547
      %v1624 = vsub.f32 %v1449, %v1584
      %v1625 = vsub.f32 %v1453, %v1547
      %v1626 = vsub.f32 %v1455, %v1584
      %v1627 = vsub.f32 %v1457, %v1547
      %v1628 = vsub.f32 %v1459, %v1584
      %v1629 = vsub.f32 %v1463, %v1547
      %v1630 = vsub.f32 %v1465, %v1584
      %v1631 = vsub.f32 %v1467, %v1547
      %v1632 = vsub.f32 %v1469, %v1584
      %v1633 = vsub.f32 %v1473, %v1547
      %v1634 = vsub.f32 %v1475, %v1584
      %v1635 = vsub.f32 %v1477, %v1547
      %v1636 = vsub.f32 %v1479, %v1584
      %v1637 = vsub.f32 %v1483, %v1547
      %v1638 = vsub.f32 %v1485, %v1584
      %v1639 = vsub.f32 %v1487, %v1547
      %v1640 = vsub.f32 %v1489, %v1584
      %v1641 = vsub.f32 %v1493, %v1547
      %v1642 = vsub.f32 %v1495, %v1584
      %v1643 = vsub.f32 %v1497, %v1547
      %v1644 = vsub.f32 %v1499, %v1584
      %v1645 = vsub.f32 %v1503, %v1547
      %v1646 = vsub.f32 %v1505, %v1584
      %v1647 = vsub.f32 %v1507, %v1547
      %v1648 = vsub.f32 %v1509, %v1584
      %v1649 = vmul.f32 %v1585, 1.442695
      %v1650 = vpow.pop %v1649
      %v1651 = vmul.f32 %v1586, 1.442695
      %v1652 = vpow.pop %v1651
      %v1653 = vmul.f32 %v1587, 1.442695
      %v1654 = vpow.pop %v1653
      %v1655 = vmul.f32 %v1588, 1.442695
      %v1656 = vpow.pop %v1655
      %v1657 = vmul.f32 %v1589, 1.442695
      %v1658 = vpow.pop %v1657
      %v1659 = vmul.f32 %v1590, 1.442695
      %v1660 = vpow.pop %v1659
      %v1661 = vmul.f32 %v1591, 1.442695
      %v1662 = vpow.pop %v1661
      %v1663 = vmul.f32 %v1592, 1.442695
      %v1664 = vpow.pop %v1663
      %v1665 = vmul.f32 %v1593, 1.442695
      %v1666 = vpow.pop %v1665
      %v1667 = vmul.f32 %v1594, 1.442695
      %v1668 = vpow.pop %v1667
      %v1669 = vmul.f32 %v1595, 1.442695
      %v1670 = vpow.pop %v1669
      %v1671 = vmul.f32 %v1596, 1.442695
      %v1672 = vpow.pop %v1671
      %v1673 = vmul.f32 %v1597, 1.442695
      %v1674 = vpow.pop %v1673
      %v1675 = vmul.f32 %v1598, 1.442695
      %v1676 = vpow.pop %v1675
      %v1677 = vmul.f32 %v1599, 1.442695
      %v1678 = vpow.pop %v1677
      %v1679 = vmul.f32 %v1600, 1.442695
      %v1680 = vpow.pop %v1679
      %v1681 = vmul.f32 %v1601, 1.442695
      %v1682 = vpow.pop %v1681
      %v1683 = vmul.f32 %v1602, 1.442695
      %v1684 = vpow.pop %v1683
      %v1685 = vmul.f32 %v1603, 1.442695
      %v1686 = vpow.pop %v1685
      %v1687 = vmul.f32 %v1604, 1.442695
      %v1688 = vpow.pop %v1687
      %v1689 = vmul.f32 %v1605, 1.442695
      %v1690 = vpow.pop %v1689
      %v1691 = vmul.f32 %v1606, 1.442695
      %v1692 = vpow.pop %v1691
      %v1693 = vmul.f32 %v1607, 1.442695
      %v1694 = vpow.pop %v1693
      %v1695 = vmul.f32 %v1608, 1.442695
      %v1696 = vpow.pop %v1695
      %v1697 = vmul.f32 %v1609, 1.442695
      %v1698 = vpow.pop %v1697
      %v1699 = vmul.f32 %v1610, 1.442695
      %v1700 = vpow.pop %v1699
      %v1701 = vmul.f32 %v1611, 1.442695
      %v1702 = vpow.pop %v1701
      %v1703 = vmul.f32 %v1612, 1.442695
      %v1704 = vpow.pop %v1703
      %v1705 = vmul.f32 %v1613, 1.442695
      %v1706 = vpow.pop %v1705
      %v1707 = vmul.f32 %v1614, 1.442695
      %v1708 = vpow.pop %v1707
      %v1709 = vmul.f32 %v1615, 1.442695
      %v1710 = vpow.pop %v1709
      %v1711 = vmul.f32 %v1616, 1.442695
      %v1712 = vpow.pop %v1711
      %v1713 = vmul.f32 %v1617, 1.442695
      %v1714 = vpow.pop %v1713
      %v1715 = vmul.f32 %v1618, 1.442695
      %v1716 = vpow.pop %v1715
      %v1717 = vmul.f32 %v1619, 1.442695
      %v1718 = vpow.pop %v1717
      %v1719 = vmul.f32 %v1620, 1.442695
      %v1720 = vpow.pop %v1719
      %v1721 = vmul.f32 %v1621, 1.442695
      %v1722 = vpow.pop %v1721
      %v1723 = vmul.f32 %v1622, 1.442695
      %v1724 = vpow.pop %v1723
      %v1725 = vmul.f32 %v1623, 1.442695
      %v1726 = vpow.pop %v1725
      %v1727 = vmul.f32 %v1624, 1.442695
      %v1728 = vpow.pop %v1727
      %v1729 = vmul.f32 %v1625, 1.442695
      %v1730 = vpow.pop %v1729
      %v1731 = vmul.f32 %v1626, 1.442695
      %v1732 = vpow.pop %v1731
      %v1733 = vmul.f32 %v1627, 1.442695
      %v1734 = vpow.pop %v1733
      %v1735 = vmul.f32 %v1628, 1.442695
      %v1736 = vpow.pop %v1735
      %v1737 = vmul.f32 %v1629, 1.442695
      %v1738 = vpow.pop %v1737
      %v1739 = vmul.f32 %v1630, 1.442695
      %v1740 = vpow.pop %v1739
      %v1741 = vmul.f32 %v1631, 1.442695
      %v1742 = vpow.pop %v1741
      %v1743 = vmul.f32 %v1632, 1.442695
      %v1744 = vpow.pop %v1743
      %v1745 = vmul.f32 %v1633, 1.442695
      %v1746 = vpow.pop %v1745
      %v1747 = vmul.f32 %v1634, 1.442695
      %v1748 = vpow.pop %v1747
      %v1749 = vmul.f32 %v1635, 1.442695
      %v1750 = vpow.pop %v1749
      %v1751 = vmul.f32 %v1636, 1.442695
      %v1752 = vpow.pop %v1751
      %v1753 = vmul.f32 %v1637, 1.442695
      %v1754 = vpow.pop %v1753
      %v1755 = vmul.f32 %v1638, 1.442695
      %v1756 = vpow.pop %v1755
      %v1757 = vmul.f32 %v1639, 1.442695
      %v1758 = vpow.pop %v1757
      %v1759 = vmul.f32 %v1640, 1.442695
      %v1760 = vpow.pop %v1759
      %v1761 = vmul.f32 %v1641, 1.442695
      %v1762 = vpow.pop %v1761
      %v1763 = vmul.f32 %v1642, 1.442695
      %v1764 = vpow.pop %v1763
      %v1765 = vmul.f32 %v1643, 1.442695
      %v1766 = vpow.pop %v1765
      %v1767 = vmul.f32 %v1644, 1.442695
      %v1768 = vpow.pop %v1767
      %v1769 = vmul.f32 %v1645, 1.442695
      %v1770 = vpow.pop %v1769
      %v1771 = vmul.f32 %v1646, 1.442695
      %v1772 = vpow.pop %v1771
      %v1773 = vmul.f32 %v1647, 1.442695
      %v1774 = vpow.pop %v1773
      %v1775 = vmul.f32 %v1648, 1.442695
      %v1776 = vpow.pop %v1775
      %v1777 = vadd.f32 %v1650, %v1654
      %v1778 = vadd.f32 %v1777, %v1658
      %v1779 = vadd.f32 %v1778, %v1662
      %v1780 = vadd.f32 %v1779, %v1666
      %v1781 = vadd.f32 %v1780, %v1670
      %v1782 = vadd.f32 %v1781, %v1674
      %v1783 = vadd.f32 %v1782, %v1678
      %v1784 = vadd.f32 %v1783, %v1682
      %v1785 = vadd.f32 %v1784, %v1686
      %v1786 = vadd.f32 %v1785, %v1690
      %v1787 = vadd.f32 %v1786, %v1694
      %v1788 = vadd.f32 %v1787, %v1698
      %v1789 = vadd.f32 %v1788, %v1702
      %v1790 = vadd.f32 %v1789, %v1706
      %v1791 = vadd.f32 %v1790, %v1710
      %v1792 = vadd.f32 %v1791, %v1714
      %v1793 = vadd.f32 %v1792, %v1718
      %v1794 = vadd.f32 %v1793, %v1722
      %v1795 = vadd.f32 %v1794, %v1726
      %v1796 = vadd.f32 %v1795, %v1730
      %v1797 = vadd.f32 %v1796, %v1734
      %v1798 = vadd.f32 %v1797, %v1738
      %v1799 = vadd.f32 %v1798, %v1742
      %v1800 = vadd.f32 %v1799, %v1746
      %v1801 = vadd.f32 %v1800, %v1750
      %v1802 = vadd.f32 %v1801, %v1754
      %v1803 = vadd.f32 %v1802, %v1758
      %v1804 = vadd.f32 %v1803, %v1762
      %v1805 = vadd.f32 %v1804, %v1766
      %v1806 = vadd.f32 %v1805, %v1770
      %v1807 = vadd.f32 %v1806, %v1774
      %v1808 = vrot.slane %v1807, 4
      %v1809 = vadd.f32 %v1807, %v1808
      %v1810 = vrot.slane %v1809, 2
      %v1811 = vadd.f32 %v1809, %v1810
      %v1812 = vrot.slane %v1811, 1
      %v1813 = vadd.f32 %v1811, %v1812
      %v1814 = vadd.f32 %v1652, %v1656
      %v1815 = vadd.f32 %v1814, %v1660
      %v1816 = vadd.f32 %v1815, %v1664
      %v1817 = vadd.f32 %v1816, %v1668
      %v1818 = vadd.f32 %v1817, %v1672
      %v1819 = vadd.f32 %v1818, %v1676
      %v1820 = vadd.f32 %v1819, %v1680
      %v1821 = vadd.f32 %v1820, %v1684
      %v1822 = vadd.f32 %v1821, %v1688
      %v1823 = vadd.f32 %v1822, %v1692
      %v1824 = vadd.f32 %v1823, %v1696
      %v1825 = vadd.f32 %v1824, %v1700
      %v1826 = vadd.f32 %v1825, %v1704
      %v1827 = vadd.f32 %v1826, %v1708
      %v1828 = vadd.f32 %v1827, %v1712
      %v1829 = vadd.f32 %v1828, %v1716
      %v1830 = vadd.f32 %v1829, %v1720
      %v1831 = vadd.f32 %v1830, %v1724
      %v1832 = vadd.f32 %v1831, %v1728
      %v1833 = vadd.f32 %v1832, %v1732
      %v1834 = vadd.f32 %v1833, %v1736
      %v1835 = vadd.f32 %v1834, %v1740
      %v1836 = vadd.f32 %v1835, %v1744
      %v1837 = vadd.f32 %v1836, %v1748
      %v1838 = vadd.f32 %v1837, %v1752
      %v1839 = vadd.f32 %v1838, %v1756
      %v1840 = vadd.f32 %v1839, %v1760
      %v1841 = vadd.f32 %v1840, %v1764
      %v1842 = vadd.f32 %v1841, %v1768
      %v1843 = vadd.f32 %v1842, %v1772
      %v1844 = vadd.f32 %v1843, %v1776
      %v1845 = vrot.slane %v1844, 4
      %v1846 = vadd.f32 %v1844, %v1845
      %v1847 = vrot.slane %v1846, 2
      %v1848 = vadd.f32 %v1846, %v1847
      %v1849 = vrot.slane %v1848, 1
      %v1850 = vadd.f32 %v1848, %v1849
      %v1851 = vrcp.pop %v1813
      %v1852 = vrcp.pop %v1850
      %v1853 = vmul.f32 %v1650, %v1851
      %v1854 = vmul.f32 %v1652, %v1852
      %v1855 = vmul.f32 %v1654, %v1851
      %v1856 = vmul.f32 %v1656, %v1852
      %v1857 = vmul.f32 %v1658, %v1851
      %v1858 = vmul.f32 %v1660, %v1852
      %v1859 = vmul.f32 %v1662, %v1851
      %v1860 = vmul.f32 %v1664, %v1852
      %v1861 = vmul.f32 %v1666, %v1851
      %v1862 = vmul.f32 %v1668, %v1852
      %v1863 = vmul.f32 %v1670, %v1851
      %v1864 = vmul.f32 %v1672, %v1852
      %v1865 = vmul.f32 %v1674, %v1851
      %v1866 = vmul.f32 %v1676, %v1852
      %v1867 = vmul.f32 %v1678, %v1851
      %v1868 = vmul.f32 %v1680, %v1852
      %v1869 = vmul.f32 %v1682, %v1851
      %v1870 = vmul.f32 %v1684, %v1852
      %v1871 = vmul.f32 %v1686, %v1851
      %v1872 = vmul.f32 %v1688, %v1852
      %v1873 = vmul.f32 %v1690, %v1851
      %v1874 = vmul.f32 %v1692, %v1852
      %v1875 = vmul.f32 %v1694, %v1851
      %v1876 = vmul.f32 %v1696, %v1852
      %v1877 = vmul.f32 %v1698, %v1851
      %v1878 = vmul.f32 %v1700, %v1852
      %v1879 = vmul.f32 %v1702, %v1851
      %v1880 = vmul.f32 %v1704, %v1852
      %v1881 = vmul.f32 %v1706, %v1851
      %v1882 = vmul.f32 %v1708, %v1852
      %v1883 = vmul.f32 %v1710, %v1851
      %v1884 = vmul.f32 %v1712, %v1852
      %v1885 = vmul.f32 %v1714, %v1851
      %v1886 = vmul.f32 %v1716, %v1852
      %v1887 = vmul.f32 %v1718, %v1851
      %v1888 = vmul.f32 %v1720, %v1852
      %v1889 = vmul.f32 %v1722, %v1851
      %v1890 = vmul.f32 %v1724, %v1852
      %v1891 = vmul.f32 %v1726, %v1851
      %v1892 = vmul.f32 %v1728, %v1852
      %v1893 = vmul.f32 %v1730, %v1851
      %v1894 = vmul.f32 %v1732, %v1852
      %v1895 = vmul.f32 %v1734, %v1851
      %v1896 = vmul.f32 %v1736, %v1852
      %v1897 = vmul.f32 %v1738, %v1851
      %v1898 = vmul.f32 %v1740, %v1852
      %v1899 = vmul.f32 %v1742, %v1851
      %v1900 = vmul.f32 %v1744, %v1852
      %v1901 = vmul.f32 %v1746, %v1851
      %v1902 = vmul.f32 %v1748, %v1852
      %v1903 = vmul.f32 %v1750, %v1851
      %v1904 = vmul.f32 %v1752, %v1852
      %v1905 = vmul.f32 %v1754, %v1851
      %v1906 = vmul.f32 %v1756, %v1852
      %v1907 = vmul.f32 %v1758, %v1851
      %v1908 = vmul.f32 %v1760, %v1852
      %v1909 = vmul.f32 %v1762, %v1851
      %v1910 = vmul.f32 %v1764, %v1852
      %v1911 = vmul.f32 %v1766, %v1851
      %v1912 = vmul.f32 %v1768, %v1852
      %v1913 = vmul.f32 %v1770, %v1851
      %v1914 = vmul.f32 %v1772, %v1852
      %v1915 = vmul.f32 %v1774, %v1851
      %v1916 = vmul.f32 %v1776, %v1852
      %v1917 = vpack.c.bf16 %v1855, %v1853
      %v1918 = vpack.c.bf16 %v1856, %v1854
      %v1919 = vpack.c.bf16 %v1859, %v1857
      %v1920 = vpack.c.bf16 %v1860, %v1858
      %v1921 = vpack.c.bf16 %v1863, %v1861
      %v1922 = vpack.c.bf16 %v1864, %v1862
      %v1923 = vpack.c.bf16 %v1867, %v1865
      %v1924 = vpack.c.bf16 %v1868, %v1866
      %v1925 = vpack.c.bf16 %v1871, %v1869
      %v1926 = vpack.c.bf16 %v1872, %v1870
      %v1927 = vpack.c.bf16 %v1875, %v1873
      %v1928 = vpack.c.bf16 %v1876, %v1874
      %v1929 = vpack.c.bf16 %v1879, %v1877
      %v1930 = vpack.c.bf16 %v1880, %v1878
      %v1931 = vpack.c.bf16 %v1883, %v1881
      %v1932 = vpack.c.bf16 %v1884, %v1882
      %v1933 = vpack.c.bf16 %v1887, %v1885
      %v1934 = vpack.c.bf16 %v1888, %v1886
      %v1935 = vpack.c.bf16 %v1891, %v1889
      %v1936 = vpack.c.bf16 %v1892, %v1890
      %v1937 = vpack.c.bf16 %v1895, %v1893
      %v1938 = vpack.c.bf16 %v1896, %v1894
      %v1939 = vpack.c.bf16 %v1899, %v1897
      %v1940 = vpack.c.bf16 %v1900, %v1898
      %v1941 = vpack.c.bf16 %v1903, %v1901
      %v1942 = vpack.c.bf16 %v1904, %v1902
      %v1943 = vpack.c.bf16 %v1907, %v1905
      %v1944 = vpack.c.bf16 %v1908, %v1906
      %v1945 = vpack.c.bf16 %v1911, %v1909
      %v1946 = vpack.c.bf16 %v1912, %v1910
      %v1947 = vpack.c.bf16 %v1915, %v1913
      %v1948 = vpack.c.bf16 %v1916, %v1914
      %v1949 = vpack.c.bf16 %v1191, %v1191
      %v1950 = vpack.c.bf16 %v1193, %v1193
      %v1951 = vpack.c.bf16 %v1201, %v1201
      %v1952 = vpack.c.bf16 %v1203, %v1203
      %v1953 = vpack.c.bf16 %v1221, %v1217
      %v1954 = vpack.c.bf16 %v1223, %v1219
      %1955 = vxpose.xlu0.c.b16.start [1/8] %v1951, 128
      %1956 = vxpose.xlu0.c.b16.cont [2/8] 0, 128
      %1957 = vxpose.xlu0.c.b16.cont [3/8] 0, 128
      %1958 = vxpose.xlu0.c.b16.cont [4/8] 0, 128
      %1959 = vxpose.xlu0.c.b16.cont [5/8] 0, 128
      %1960 = vxpose.xlu0.c.b16.cont [6/8] 0, 128
      %1961 = vxpose.xlu0.c.b16.cont [7/8] 0, 128
      %1962 = vxpose.xlu0.c.b16.end [8/8] 0, 128
      %v1963 = vpop.trf.xlu0
      %v1964 = vpop.trf.xlu0
      %v1965 = vpop.trf.xlu0
      %v1966 = vpop.trf.xlu0
      %v1967 = vpop.trf.xlu0
      %v1968 = vpop.trf.xlu0
      %v1969 = vpop.trf.xlu0
      %v1970 = vpop.trf.xlu0
      %1971 = vxpose.xlu0.c.b16.start [1/8] %v1952, 128
      %1972 = vxpose.xlu0.c.b16.cont [2/8] 0, 128
      %1973 = vxpose.xlu0.c.b16.cont [3/8] 0, 128
      %1974 = vxpose.xlu0.c.b16.cont [4/8] 0, 128
      %1975 = vxpose.xlu0.c.b16.cont [5/8] 0, 128
      %1976 = vxpose.xlu0.c.b16.cont [6/8] 0, 128
      %1977 = vxpose.xlu0.c.b16.cont [7/8] 0, 128
      %1978 = vxpose.xlu0.c.b16.end [8/8] 0, 128
      %v1979 = vpop.trf.xlu0
      %v1980 = vpop.trf.xlu0
      %v1981 = vpop.trf.xlu0
      %v1982 = vpop.trf.xlu0
      %v1983 = vpop.trf.xlu0
      %v1984 = vpop.trf.xlu0
      %v1985 = vpop.trf.xlu0
      %v1986 = vpop.trf.xlu0
      %v1988 = vsel %vm1263, %v1963, 0
      %v1991 = vsel %vm1263, %v1964, 0
      %v1994 = vsel %vm1263, %v1965, 0
      %v1997 = vsel %vm1263, %v1966, 0
      %v2000 = vsel %vm1263, %v1967, 0
      %v2003 = vsel %vm1263, %v1968, 0
      %v2006 = vsel %vm1263, %v1969, 0
      %v2009 = vsel %vm1263, %v1970, 0
      %v2012 = vsel %vm1263, %v1979, 0
      %v2015 = vsel %vm1263, %v1980, 0
      %v2018 = vsel %vm1263, %v1981, 0
      %v2021 = vsel %vm1263, %v1982, 0
      %v2024 = vsel %vm1263, %v1983, 0
      %v2027 = vsel %vm1263, %v1984, 0
      %v2030 = vsel %vm1263, %v1985, 0
      %v2033 = vsel %vm1263, %v1986, 0
      %v2036 = vsel %vm745, %v1949, 0
      %v2039 = vsel %vm745, %v1950, 0
      %2041 = vmatprep.subr.bf16.mxu0 %v2039
      %2042 = vmatpush1.bf16.msra.mxu0 %v2036
      %2043 = vmatprep.subr.bf16.mxu0 0
      %2044 = vmatpush1.bf16.msra.mxu0 0
      %2045 = vmatprep.subr.bf16.mxu0 0
      %2046 = vmatpush1.bf16.msra.mxu0 0
      %2047 = vmatprep.subr.bf16.mxu0 0
      %2048 = vmatpush1.bf16.msra.mxu0 0
      %2049 = vmatprep.subr.bf16.mxu0 0
      %2050 = vmatpush1.bf16.msra.mxu0 0
      %2051 = vmatprep.subr.bf16.mxu0 0
      %2052 = vmatpush1.bf16.msra.mxu0 0
      %2053 = vmatprep.subr.bf16.mxu0 0
      %2054 = vmatpush1.bf16.msra.mxu0 0
      %2055 = vmatprep.subr.bf16.mxu0 0
      %2056 = vmatpush1.bf16.msra.mxu0 0
      %2057 = vmatprep.subr.bf16.mxu0 0
      %2058 = vmatpush1.bf16.msra.mxu0 0
      %2059 = vmatprep.subr.bf16.mxu0 0
      %2060 = vmatpush1.bf16.msra.mxu0 0
      %2061 = vmatprep.subr.bf16.mxu0 0
      %2062 = vmatpush1.bf16.msra.mxu0 0
      %2063 = vmatprep.subr.bf16.mxu0 0
      %2064 = vmatpush1.bf16.msra.mxu0 0
      %2065 = vmatprep.subr.bf16.mxu0 0
      %2066 = vmatpush1.bf16.msra.mxu0 0
      %2067 = vmatprep.subr.bf16.mxu0 0
      %2068 = vmatpush1.bf16.msra.mxu0 0
      %2069 = vmatprep.subr.bf16.mxu0 0
      %2070 = vmatpush1.bf16.msra.mxu0 0
      %2071 = vmatprep.subr.bf16.mxu0 0
      %2072 = vmatpush1.bf16.msra.mxu0 0
      %2073 = vmatprep.mubr.bf16.mxu0 0
      %2074 = vmatmul.mubr.bf16.gmra.mrb[0].mxu0 %v1988
      %v2075 = vpop.f32.mrb[0].mxu0
      %v2076 = vadd.f32 %v566, %v2075
      %v2077 = vpop.f32.mrb[0].mxu0
      %v2078 = vadd.f32 %v567, %v2077
      %v2079 = vpop.f32.mrb[0].mxu0
      %v2080 = vadd.f32 %v568, %v2079
      %v2081 = vpop.f32.mrb[0].mxu0
      %v2082 = vadd.f32 %v569, %v2081
      %2083 = vmatprep.mubr.bf16.mxu0 0
      %2084 = vmatmul.mubr.bf16.gmra.mrb[0].mxu0 %v1991
      %v2085 = vpop.f32.mrb[0].mxu0
      %v2086 = vadd.f32 %v570, %v2085
      %v2087 = vpop.f32.mrb[0].mxu0
      %v2088 = vadd.f32 %v571, %v2087
      %v2089 = vpop.f32.mrb[0].mxu0
      %v2090 = vadd.f32 %v572, %v2089
      %v2091 = vpop.f32.mrb[0].mxu0
      %v2092 = vadd.f32 %v573, %v2091
      %2093 = vmatprep.mubr.bf16.mxu0 0
      %2094 = vmatmul.mubr.bf16.gmra.mrb[0].mxu0 %v1994
      %v2095 = vpop.f32.mrb[0].mxu0
      %v2096 = vadd.f32 %v574, %v2095
      %v2097 = vpop.f32.mrb[0].mxu0
      %v2098 = vadd.f32 %v575, %v2097
      %v2099 = vpop.f32.mrb[0].mxu0
      %v2100 = vadd.f32 %v576, %v2099
      %v2101 = vpop.f32.mrb[0].mxu0
      %v2102 = vadd.f32 %v577, %v2101
      %2103 = vmatprep.mubr.bf16.mxu0 0
      %2104 = vmatmul.mubr.bf16.gmra.mrb[0].mxu0 %v1997
      %v2105 = vpop.f32.mrb[0].mxu0
      %v2106 = vadd.f32 %v578, %v2105
      %v2107 = vpop.f32.mrb[0].mxu0
      %v2108 = vadd.f32 %v579, %v2107
      %v2109 = vpop.f32.mrb[0].mxu0
      %v2110 = vadd.f32 %v580, %v2109
      %v2111 = vpop.f32.mrb[0].mxu0
      %v2112 = vadd.f32 %v581, %v2111
      %2113 = vmatprep.mubr.bf16.mxu0 0
      %2114 = vmatmul.mubr.bf16.gmra.mrb[0].mxu0 %v2000
      %v2115 = vpop.f32.mrb[0].mxu0
      %v2116 = vadd.f32 %v582, %v2115
      %v2117 = vpop.f32.mrb[0].mxu0
      %v2118 = vadd.f32 %v583, %v2117
      %v2119 = vpop.f32.mrb[0].mxu0
      %v2120 = vadd.f32 %v584, %v2119
      %v2121 = vpop.f32.mrb[0].mxu0
      %v2122 = vadd.f32 %v585, %v2121
      %2123 = vmatprep.mubr.bf16.mxu0 0
      %2124 = vmatmul.mubr.bf16.gmra.mrb[0].mxu0 %v2003
      %v2125 = vpop.f32.mrb[0].mxu0
      %v2126 = vadd.f32 %v586, %v2125
      %v2127 = vpop.f32.mrb[0].mxu0
      %v2128 = vadd.f32 %v587, %v2127
      %v2129 = vpop.f32.mrb[0].mxu0
      %v2130 = vadd.f32 %v588, %v2129
      %v2131 = vpop.f32.mrb[0].mxu0
      %v2132 = vadd.f32 %v589, %v2131
      %2133 = vmatprep.mubr.bf16.mxu0 0
      %2134 = vmatmul.mubr.bf16.gmra.mrb[0].mxu0 %v2006
      %v2135 = vpop.f32.mrb[0].mxu0
      %v2136 = vadd.f32 %v590, %v2135
      %v2137 = vpop.f32.mrb[0].mxu0
      %v2138 = vadd.f32 %v591, %v2137
      %v2139 = vpop.f32.mrb[0].mxu0
      %v2140 = vadd.f32 %v592, %v2139
      %v2141 = vpop.f32.mrb[0].mxu0
      %v2142 = vadd.f32 %v593, %v2141
      %2143 = vmatprep.mubr.bf16.mxu0 0
      %2144 = vmatmul.mubr.bf16.gmra.mrb[0].mxu0 %v2009
      %v2145 = vpop.f32.mrb[0].mxu0
      %v2146 = vadd.f32 %v594, %v2145
      %v2147 = vpop.f32.mrb[0].mxu0
      %v2148 = vadd.f32 %v595, %v2147
      %v2149 = vpop.f32.mrb[0].mxu0
      %v2150 = vadd.f32 %v596, %v2149
      %v2151 = vpop.f32.mrb[0].mxu0
      %v2152 = vadd.f32 %v597, %v2151
      %2153 = vmatprep.mubr.bf16.mxu0 0
      %2154 = vmatmul.mubr.bf16.gmra.mrb[0].mxu0 %v2012
      %v2155 = vpop.f32.mrb[0].mxu0
      %v2156 = vadd.f32 %v598, %v2155
      %v2157 = vpop.f32.mrb[0].mxu0
      %v2158 = vadd.f32 %v599, %v2157
      %v2159 = vpop.f32.mrb[0].mxu0
      %v2160 = vadd.f32 %v600, %v2159
      %v2161 = vpop.f32.mrb[0].mxu0
      %v2162 = vadd.f32 %v601, %v2161
      %2163 = vmatprep.mubr.bf16.mxu0 0
      %2164 = vmatmul.mubr.bf16.gmra.mrb[0].mxu0 %v2015
      %v2165 = vpop.f32.mrb[0].mxu0
      %v2166 = vadd.f32 %v602, %v2165
      %v2167 = vpop.f32.mrb[0].mxu0
      %v2168 = vadd.f32 %v603, %v2167
      %v2169 = vpop.f32.mrb[0].mxu0
      %v2170 = vadd.f32 %v604, %v2169
      %v2171 = vpop.f32.mrb[0].mxu0
      %v2172 = vadd.f32 %v605, %v2171
      %2173 = vmatprep.mubr.bf16.mxu0 0
      %2174 = vmatmul.mubr.bf16.gmra.mrb[0].mxu0 %v2018
      %v2175 = vpop.f32.mrb[0].mxu0
      %v2176 = vadd.f32 %v606, %v2175
      %v2177 = vpop.f32.mrb[0].mxu0
      %v2178 = vadd.f32 %v607, %v2177
      %v2179 = vpop.f32.mrb[0].mxu0
      %v2180 = vadd.f32 %v608, %v2179
      %v2181 = vpop.f32.mrb[0].mxu0
      %v2182 = vadd.f32 %v609, %v2181
      %2183 = vmatprep.mubr.bf16.mxu0 0
      %2184 = vmatmul.mubr.bf16.gmra.mrb[0].mxu0 %v2021
      %v2185 = vpop.f32.mrb[0].mxu0
      %v2186 = vadd.f32 %v610, %v2185
      %v2187 = vpop.f32.mrb[0].mxu0
      %v2188 = vadd.f32 %v611, %v2187
      %v2189 = vpop.f32.mrb[0].mxu0
      %v2190 = vadd.f32 %v612, %v2189
      %v2191 = vpop.f32.mrb[0].mxu0
      %v2192 = vadd.f32 %v613, %v2191
      %2193 = vmatprep.mubr.bf16.mxu0 0
      %2194 = vmatmul.mubr.bf16.gmra.mrb[0].mxu0 %v2024
      %v2195 = vpop.f32.mrb[0].mxu0
      %v2196 = vadd.f32 %v614, %v2195
      %v2197 = vpop.f32.mrb[0].mxu0
      %v2198 = vadd.f32 %v615, %v2197
      %v2199 = vpop.f32.mrb[0].mxu0
      %v2200 = vadd.f32 %v616, %v2199
      %v2201 = vpop.f32.mrb[0].mxu0
      %v2202 = vadd.f32 %v617, %v2201
      %2203 = vmatprep.mubr.bf16.mxu0 0
      %2204 = vmatmul.mubr.bf16.gmra.mrb[0].mxu0 %v2027
      %v2205 = vpop.f32.mrb[0].mxu0
      %v2206 = vadd.f32 %v618, %v2205
      %v2207 = vpop.f32.mrb[0].mxu0
      %v2208 = vadd.f32 %v619, %v2207
      %v2209 = vpop.f32.mrb[0].mxu0
      %v2210 = vadd.f32 %v620, %v2209
      %v2211 = vpop.f32.mrb[0].mxu0
      %v2212 = vadd.f32 %v621, %v2211
      %2213 = vmatprep.mubr.bf16.mxu0 0
      %2214 = vmatmul.mubr.bf16.gmra.mrb[0].mxu0 %v2030
      %v2215 = vpop.f32.mrb[0].mxu0
      %v2216 = vadd.f32 %v622, %v2215
      %v2217 = vpop.f32.mrb[0].mxu0
      %v2218 = vadd.f32 %v623, %v2217
      %v2219 = vpop.f32.mrb[0].mxu0
      %v2220 = vadd.f32 %v624, %v2219
      %v2221 = vpop.f32.mrb[0].mxu0
      %v2222 = vadd.f32 %v625, %v2221
      %2223 = vmatprep.mubr.bf16.mxu0 0
      %2224 = vmatmul.mubr.bf16.gmra.mrb[0].mxu0 %v2033
      %v2225 = vpop.f32.mrb[0].mxu0
      %v2226 = vadd.f32 %v626, %v2225
      %v2227 = vpop.f32.mrb[0].mxu0
      %v2228 = vadd.f32 %v627, %v2227
      %v2229 = vpop.f32.mrb[0].mxu0
      %v2230 = vadd.f32 %v628, %v2229
      %v2231 = vpop.f32.mrb[0].mxu0
      %v2232 = vadd.f32 %v629, %v2231
      %2233 = vdwg.mxu0
      %v2234 = vmax.f32 %v2076, %v2086
      %v2235 = vmax.f32 %v2080, %v2090
      %v2236 = vmax.f32 %v2234, %v2096
      %v2237 = vmax.f32 %v2235, %v2100
      %v2238 = vmax.f32 %v2236, %v2106
      %v2239 = vmax.f32 %v2237, %v2110
      %v2240 = vmax.f32 %v2238, %v2116
      %v2241 = vmax.f32 %v2239, %v2120
      %v2242 = vmax.f32 %v2240, %v2126
      %v2243 = vmax.f32 %v2241, %v2130
      %v2244 = vmax.f32 %v2242, %v2136
      %v2245 = vmax.f32 %v2243, %v2140
      %v2246 = vmax.f32 %v2244, %v2146
      %v2247 = vmax.f32 %v2245, %v2150
      %v2248 = vmax.f32 %v2246, %v2156
      %v2249 = vmax.f32 %v2247, %v2160
      %v2250 = vmax.f32 %v2248, %v2166
      %v2251 = vmax.f32 %v2249, %v2170
      %v2252 = vmax.f32 %v2250, %v2176
      %v2253 = vmax.f32 %v2251, %v2180
      %v2254 = vmax.f32 %v2252, %v2186
      %v2255 = vmax.f32 %v2253, %v2190
      %v2256 = vmax.f32 %v2254, %v2196
      %v2257 = vmax.f32 %v2255, %v2200
      %v2258 = vmax.f32 %v2256, %v2206
      %v2259 = vmax.f32 %v2257, %v2210
      %v2260 = vmax.f32 %v2258, %v2216
      %v2261 = vmax.f32 %v2259, %v2220
      %v2262 = vmax.f32 %v2260, %v2226
      %v2263 = vmax.f32 %v2261, %v2230
      %v2264 = vmax.f32 %v2262, %v2263
      %v2265 = vrot.slane %v2264, 4
      %v2266 = vmax.f32 %v2264, %v2265
      %v2267 = vrot.slane %v2266, 2
      %v2268 = vmax.f32 %v2266, %v2267
      %v2269 = vrot.slane %v2268, 1
      %v2270 = vmax.f32 %v2268, %v2269
      %v2271 = vmax.f32 %v2078, %v2088
      %v2272 = vmax.f32 %v2082, %v2092
      %v2273 = vmax.f32 %v2271, %v2098
      %v2274 = vmax.f32 %v2272, %v2102
      %v2275 = vmax.f32 %v2273, %v2108
      %v2276 = vmax.f32 %v2274, %v2112
      %v2277 = vmax.f32 %v2275, %v2118
      %v2278 = vmax.f32 %v2276, %v2122
      %v2279 = vmax.f32 %v2277, %v2128
      %v2280 = vmax.f32 %v2278, %v2132
      %v2281 = vmax.f32 %v2279, %v2138
      %v2282 = vmax.f32 %v2280, %v2142
      %v2283 = vmax.f32 %v2281, %v2148
      %v2284 = vmax.f32 %v2282, %v2152
      %v2285 = vmax.f32 %v2283, %v2158
      %v2286 = vmax.f32 %v2284, %v2162
      %v2287 = vmax.f32 %v2285, %v2168
      %v2288 = vmax.f32 %v2286, %v2172
      %v2289 = vmax.f32 %v2287, %v2178
      %v2290 = vmax.f32 %v2288, %v2182
      %v2291 = vmax.f32 %v2289, %v2188
      %v2292 = vmax.f32 %v2290, %v2192
      %v2293 = vmax.f32 %v2291, %v2198
      %v2294 = vmax.f32 %v2292, %v2202
      %v2295 = vmax.f32 %v2293, %v2208
      %v2296 = vmax.f32 %v2294, %v2212
      %v2297 = vmax.f32 %v2295, %v2218
      %v2298 = vmax.f32 %v2296, %v2222
      %v2299 = vmax.f32 %v2297, %v2228
      %v2300 = vmax.f32 %v2298, %v2232
      %v2301 = vmax.f32 %v2299, %v2300
      %v2302 = vrot.slane %v2301, 4
      %v2303 = vmax.f32 %v2301, %v2302
      %v2304 = vrot.slane %v2303, 2
      %v2305 = vmax.f32 %v2303, %v2304
      %v2306 = vrot.slane %v2305, 1
      %v2307 = vmax.f32 %v2305, %v2306
      %v2308 = vsub.f32 %v2076, %v2270
      %v2309 = vsub.f32 %v2078, %v2307
      %v2310 = vsub.f32 %v2080, %v2270
      %v2311 = vsub.f32 %v2082, %v2307
      %v2312 = vsub.f32 %v2086, %v2270
      %v2313 = vsub.f32 %v2088, %v2307
      %v2314 = vsub.f32 %v2090, %v2270
      %v2315 = vsub.f32 %v2092, %v2307
      %v2316 = vsub.f32 %v2096, %v2270
      %v2317 = vsub.f32 %v2098, %v2307
      %v2318 = vsub.f32 %v2100, %v2270
      %v2319 = vsub.f32 %v2102, %v2307
      %v2320 = vsub.f32 %v2106, %v2270
      %v2321 = vsub.f32 %v2108, %v2307
      %v2322 = vsub.f32 %v2110, %v2270
      %v2323 = vsub.f32 %v2112, %v2307
      %v2324 = vsub.f32 %v2116, %v2270
      %v2325 = vsub.f32 %v2118, %v2307
      %v2326 = vsub.f32 %v2120, %v2270
      %v2327 = vsub.f32 %v2122, %v2307
      %v2328 = vsub.f32 %v2126, %v2270
      %v2329 = vsub.f32 %v2128, %v2307
      %v2330 = vsub.f32 %v2130, %v2270
      %v2331 = vsub.f32 %v2132, %v2307
      %v2332 = vsub.f32 %v2136, %v2270
      %v2333 = vsub.f32 %v2138, %v2307
      %v2334 = vsub.f32 %v2140, %v2270
      %v2335 = vsub.f32 %v2142, %v2307
      %v2336 = vsub.f32 %v2146, %v2270
      %v2337 = vsub.f32 %v2148, %v2307
      %v2338 = vsub.f32 %v2150, %v2270
      %v2339 = vsub.f32 %v2152, %v2307
      %v2340 = vsub.f32 %v2156, %v2270
      %v2341 = vsub.f32 %v2158, %v2307
      %v2342 = vsub.f32 %v2160, %v2270
      %v2343 = vsub.f32 %v2162, %v2307
      %v2344 = vsub.f32 %v2166, %v2270
      %v2345 = vsub.f32 %v2168, %v2307
      %v2346 = vsub.f32 %v2170, %v2270
      %v2347 = vsub.f32 %v2172, %v2307
      %v2348 = vsub.f32 %v2176, %v2270
      %v2349 = vsub.f32 %v2178, %v2307
      %v2350 = vsub.f32 %v2180, %v2270
      %v2351 = vsub.f32 %v2182, %v2307
      %v2352 = vsub.f32 %v2186, %v2270
      %v2353 = vsub.f32 %v2188, %v2307
      %v2354 = vsub.f32 %v2190, %v2270
      %v2355 = vsub.f32 %v2192, %v2307
      %v2356 = vsub.f32 %v2196, %v2270
      %v2357 = vsub.f32 %v2198, %v2307
      %v2358 = vsub.f32 %v2200, %v2270
      %v2359 = vsub.f32 %v2202, %v2307
      %v2360 = vsub.f32 %v2206, %v2270
      %v2361 = vsub.f32 %v2208, %v2307
      %v2362 = vsub.f32 %v2210, %v2270
      %v2363 = vsub.f32 %v2212, %v2307
      %v2364 = vsub.f32 %v2216, %v2270
      %v2365 = vsub.f32 %v2218, %v2307
      %v2366 = vsub.f32 %v2220, %v2270
      %v2367 = vsub.f32 %v2222, %v2307
      %v2368 = vsub.f32 %v2226, %v2270
      %v2369 = vsub.f32 %v2228, %v2307
      %v2370 = vsub.f32 %v2230, %v2270
      %v2371 = vsub.f32 %v2232, %v2307
      %v2372 = vmul.f32 %v2308, 1.442695
      %v2373 = vpow.pop %v2372
      %v2374 = vmul.f32 %v2309, 1.442695
      %v2375 = vpow.pop %v2374
      %v2376 = vmul.f32 %v2310, 1.442695
      %v2377 = vpow.pop %v2376
      %v2378 = vmul.f32 %v2311, 1.442695
      %v2379 = vpow.pop %v2378
      %v2380 = vmul.f32 %v2312, 1.442695
      %v2381 = vpow.pop %v2380
      %v2382 = vmul.f32 %v2313, 1.442695
      %v2383 = vpow.pop %v2382
      %v2384 = vmul.f32 %v2314, 1.442695
      %v2385 = vpow.pop %v2384
      %v2386 = vmul.f32 %v2315, 1.442695
      %v2387 = vpow.pop %v2386
      %v2388 = vmul.f32 %v2316, 1.442695
      %v2389 = vpow.pop %v2388
      %v2390 = vmul.f32 %v2317, 1.442695
      %v2391 = vpow.pop %v2390
      %v2392 = vmul.f32 %v2318, 1.442695
      %v2393 = vpow.pop %v2392
      %v2394 = vmul.f32 %v2319, 1.442695
      %v2395 = vpow.pop %v2394
      %v2396 = vmul.f32 %v2320, 1.442695
      %v2397 = vpow.pop %v2396
      %v2398 = vmul.f32 %v2321, 1.442695
      %v2399 = vpow.pop %v2398
      %v2400 = vmul.f32 %v2322, 1.442695
      %v2401 = vpow.pop %v2400
      %v2402 = vmul.f32 %v2323, 1.442695
      %v2403 = vpow.pop %v2402
      %v2404 = vmul.f32 %v2324, 1.442695
      %v2405 = vpow.pop %v2404
      %v2406 = vmul.f32 %v2325, 1.442695
      %v2407 = vpow.pop %v2406
      %v2408 = vmul.f32 %v2326, 1.442695
      %v2409 = vpow.pop %v2408
      %v2410 = vmul.f32 %v2327, 1.442695
      %v2411 = vpow.pop %v2410
      %v2412 = vmul.f32 %v2328, 1.442695
      %v2413 = vpow.pop %v2412
      %v2414 = vmul.f32 %v2329, 1.442695
      %v2415 = vpow.pop %v2414
      %v2416 = vmul.f32 %v2330, 1.442695
      %v2417 = vpow.pop %v2416
      %v2418 = vmul.f32 %v2331, 1.442695
      %v2419 = vpow.pop %v2418
      %v2420 = vmul.f32 %v2332, 1.442695
      %v2421 = vpow.pop %v2420
      %v2422 = vmul.f32 %v2333, 1.442695
      %v2423 = vpow.pop %v2422
      %v2424 = vmul.f32 %v2334, 1.442695
      %v2425 = vpow.pop %v2424
      %v2426 = vmul.f32 %v2335, 1.442695
      %v2427 = vpow.pop %v2426
      %v2428 = vmul.f32 %v2336, 1.442695
      %v2429 = vpow.pop %v2428
      %v2430 = vmul.f32 %v2337, 1.442695
      %v2431 = vpow.pop %v2430
      %v2432 = vmul.f32 %v2338, 1.442695
      %v2433 = vpow.pop %v2432
      %v2434 = vmul.f32 %v2339, 1.442695
      %v2435 = vpow.pop %v2434
      %v2436 = vmul.f32 %v2340, 1.442695
      %v2437 = vpow.pop %v2436
      %v2438 = vmul.f32 %v2341, 1.442695
      %v2439 = vpow.pop %v2438
      %v2440 = vmul.f32 %v2342, 1.442695
      %v2441 = vpow.pop %v2440
      %v2442 = vmul.f32 %v2343, 1.442695
      %v2443 = vpow.pop %v2442
      %v2444 = vmul.f32 %v2344, 1.442695
      %v2445 = vpow.pop %v2444
      %v2446 = vmul.f32 %v2345, 1.442695
      %v2447 = vpow.pop %v2446
      %v2448 = vmul.f32 %v2346, 1.442695
      %v2449 = vpow.pop %v2448
      %v2450 = vmul.f32 %v2347, 1.442695
      %v2451 = vpow.pop %v2450
      %v2452 = vmul.f32 %v2348, 1.442695
      %v2453 = vpow.pop %v2452
      %v2454 = vmul.f32 %v2349, 1.442695
      %v2455 = vpow.pop %v2454
      %v2456 = vmul.f32 %v2350, 1.442695
      %v2457 = vpow.pop %v2456
      %v2458 = vmul.f32 %v2351, 1.442695
      %v2459 = vpow.pop %v2458
      %v2460 = vmul.f32 %v2352, 1.442695
      %v2461 = vpow.pop %v2460
      %v2462 = vmul.f32 %v2353, 1.442695
      %v2463 = vpow.pop %v2462
      %v2464 = vmul.f32 %v2354, 1.442695
      %v2465 = vpow.pop %v2464
      %v2466 = vmul.f32 %v2355, 1.442695
      %v2467 = vpow.pop %v2466
      %v2468 = vmul.f32 %v2356, 1.442695
      %v2469 = vpow.pop %v2468
      %v2470 = vmul.f32 %v2357, 1.442695
      %v2471 = vpow.pop %v2470
      %v2472 = vmul.f32 %v2358, 1.442695
      %v2473 = vpow.pop %v2472
      %v2474 = vmul.f32 %v2359, 1.442695
      %v2475 = vpow.pop %v2474
      %v2476 = vmul.f32 %v2360, 1.442695
      %v2477 = vpow.pop %v2476
      %v2478 = vmul.f32 %v2361, 1.442695
      %v2479 = vpow.pop %v2478
      %v2480 = vmul.f32 %v2362, 1.442695
      %v2481 = vpow.pop %v2480
      %v2482 = vmul.f32 %v2363, 1.442695
      %v2483 = vpow.pop %v2482
      %v2484 = vmul.f32 %v2364, 1.442695
      %v2485 = vpow.pop %v2484
      %v2486 = vmul.f32 %v2365, 1.442695
      %v2487 = vpow.pop %v2486
      %v2488 = vmul.f32 %v2366, 1.442695
      %v2489 = vpow.pop %v2488
      %v2490 = vmul.f32 %v2367, 1.442695
      %v2491 = vpow.pop %v2490
      %v2492 = vmul.f32 %v2368, 1.442695
      %v2493 = vpow.pop %v2492
      %v2494 = vmul.f32 %v2369, 1.442695
      %v2495 = vpow.pop %v2494
      %v2496 = vmul.f32 %v2370, 1.442695
      %v2497 = vpow.pop %v2496
      %v2498 = vmul.f32 %v2371, 1.442695
      %v2499 = vpow.pop %v2498
      %v2500 = vadd.f32 %v2373, %v2377
      %v2501 = vadd.f32 %v2500, %v2381
      %v2502 = vadd.f32 %v2501, %v2385
      %v2503 = vadd.f32 %v2502, %v2389
      %v2504 = vadd.f32 %v2503, %v2393
      %v2505 = vadd.f32 %v2504, %v2397
      %v2506 = vadd.f32 %v2505, %v2401
      %v2507 = vadd.f32 %v2506, %v2405
      %v2508 = vadd.f32 %v2507, %v2409
      %v2509 = vadd.f32 %v2508, %v2413
      %v2510 = vadd.f32 %v2509, %v2417
      %v2511 = vadd.f32 %v2510, %v2421
      %v2512 = vadd.f32 %v2511, %v2425
      %v2513 = vadd.f32 %v2512, %v2429
      %v2514 = vadd.f32 %v2513, %v2433
      %v2515 = vadd.f32 %v2514, %v2437
      %v2516 = vadd.f32 %v2515, %v2441
      %v2517 = vadd.f32 %v2516, %v2445
      %v2518 = vadd.f32 %v2517, %v2449
      %v2519 = vadd.f32 %v2518, %v2453
      %v2520 = vadd.f32 %v2519, %v2457
      %v2521 = vadd.f32 %v2520, %v2461
      %v2522 = vadd.f32 %v2521, %v2465
      %v2523 = vadd.f32 %v2522, %v2469
      %v2524 = vadd.f32 %v2523, %v2473
      %v2525 = vadd.f32 %v2524, %v2477
      %v2526 = vadd.f32 %v2525, %v2481
      %v2527 = vadd.f32 %v2526, %v2485
      %v2528 = vadd.f32 %v2527, %v2489
      %v2529 = vadd.f32 %v2528, %v2493
      %v2530 = vadd.f32 %v2529, %v2497
      %v2531 = vrot.slane %v2530, 4
      %v2532 = vadd.f32 %v2530, %v2531
      %v2533 = vrot.slane %v2532, 2
      %v2534 = vadd.f32 %v2532, %v2533
      %v2535 = vrot.slane %v2534, 1
      %v2536 = vadd.f32 %v2534, %v2535
      %v2537 = vadd.f32 %v2375, %v2379
      %v2538 = vadd.f32 %v2537, %v2383
      %v2539 = vadd.f32 %v2538, %v2387
      %v2540 = vadd.f32 %v2539, %v2391
      %v2541 = vadd.f32 %v2540, %v2395
      %v2542 = vadd.f32 %v2541, %v2399
      %v2543 = vadd.f32 %v2542, %v2403
      %v2544 = vadd.f32 %v2543, %v2407
      %v2545 = vadd.f32 %v2544, %v2411
      %v2546 = vadd.f32 %v2545, %v2415
      %v2547 = vadd.f32 %v2546, %v2419
      %v2548 = vadd.f32 %v2547, %v2423
      %v2549 = vadd.f32 %v2548, %v2427
      %v2550 = vadd.f32 %v2549, %v2431
      %v2551 = vadd.f32 %v2550, %v2435
      %v2552 = vadd.f32 %v2551, %v2439
      %v2553 = vadd.f32 %v2552, %v2443
      %v2554 = vadd.f32 %v2553, %v2447
      %v2555 = vadd.f32 %v2554, %v2451
      %v2556 = vadd.f32 %v2555, %v2455
      %v2557 = vadd.f32 %v2556, %v2459
      %v2558 = vadd.f32 %v2557, %v2463
      %v2559 = vadd.f32 %v2558, %v2467
      %v2560 = vadd.f32 %v2559, %v2471
      %v2561 = vadd.f32 %v2560, %v2475
      %v2562 = vadd.f32 %v2561, %v2479
      %v2563 = vadd.f32 %v2562, %v2483
      %v2564 = vadd.f32 %v2563, %v2487
      %v2565 = vadd.f32 %v2564, %v2491
      %v2566 = vadd.f32 %v2565, %v2495
      %v2567 = vadd.f32 %v2566, %v2499
      %v2568 = vrot.slane %v2567, 4
      %v2569 = vadd.f32 %v2567, %v2568
      %v2570 = vrot.slane %v2569, 2
      %v2571 = vadd.f32 %v2569, %v2570
      %v2572 = vrot.slane %v2571, 1
      %v2573 = vadd.f32 %v2571, %v2572
      %v2574 = vrcp.pop %v2536
      %v2575 = vrcp.pop %v2573
      %v2576 = vmul.f32 %v2373, %v2574
      %v2577 = vmul.f32 %v2375, %v2575
      %v2578 = vmul.f32 %v2377, %v2574
      %v2579 = vmul.f32 %v2379, %v2575
      %v2580 = vmul.f32 %v2381, %v2574
      %v2581 = vmul.f32 %v2383, %v2575
      %v2582 = vmul.f32 %v2385, %v2574
      %v2583 = vmul.f32 %v2387, %v2575
      %v2584 = vmul.f32 %v2389, %v2574
      %v2585 = vmul.f32 %v2391, %v2575
      %v2586 = vmul.f32 %v2393, %v2574
      %v2587 = vmul.f32 %v2395, %v2575
      %v2588 = vmul.f32 %v2397, %v2574
      %v2589 = vmul.f32 %v2399, %v2575
      %v2590 = vmul.f32 %v2401, %v2574
      %v2591 = vmul.f32 %v2403, %v2575
      %v2592 = vmul.f32 %v2405, %v2574
      %v2593 = vmul.f32 %v2407, %v2575
      %v2594 = vmul.f32 %v2409, %v2574
      %v2595 = vmul.f32 %v2411, %v2575
      %v2596 = vmul.f32 %v2413, %v2574
      %v2597 = vmul.f32 %v2415, %v2575
      %v2598 = vmul.f32 %v2417, %v2574
      %v2599 = vmul.f32 %v2419, %v2575
      %v2600 = vmul.f32 %v2421, %v2574
      %v2601 = vmul.f32 %v2423, %v2575
      %v2602 = vmul.f32 %v2425, %v2574
      %v2603 = vmul.f32 %v2427, %v2575
      %v2604 = vmul.f32 %v2429, %v2574
      %v2605 = vmul.f32 %v2431, %v2575
      %v2606 = vmul.f32 %v2433, %v2574
      %v2607 = vmul.f32 %v2435, %v2575
      %v2608 = vmul.f32 %v2437, %v2574
      %v2609 = vmul.f32 %v2439, %v2575
      %v2610 = vmul.f32 %v2441, %v2574
      %v2611 = vmul.f32 %v2443, %v2575
      %v2612 = vmul.f32 %v2445, %v2574
      %v2613 = vmul.f32 %v2447, %v2575
      %v2614 = vmul.f32 %v2449, %v2574
      %v2615 = vmul.f32 %v2451, %v2575
      %v2616 = vmul.f32 %v2453, %v2574
      %v2617 = vmul.f32 %v2455, %v2575
      %v2618 = vmul.f32 %v2457, %v2574
      %v2619 = vmul.f32 %v2459, %v2575
      %v2620 = vmul.f32 %v2461, %v2574
      %v2621 = vmul.f32 %v2463, %v2575
      %v2622 = vmul.f32 %v2465, %v2574
      %v2623 = vmul.f32 %v2467, %v2575
      %v2624 = vmul.f32 %v2469, %v2574
      %v2625 = vmul.f32 %v2471, %v2575
      %v2626 = vmul.f32 %v2473, %v2574
      %v2627 = vmul.f32 %v2475, %v2575
      %v2628 = vmul.f32 %v2477, %v2574
      %v2629 = vmul.f32 %v2479, %v2575
      %v2630 = vmul.f32 %v2481, %v2574
      %v2631 = vmul.f32 %v2483, %v2575
      %v2632 = vmul.f32 %v2485, %v2574
      %v2633 = vmul.f32 %v2487, %v2575
      %v2634 = vmul.f32 %v2489, %v2574
      %v2635 = vmul.f32 %v2491, %v2575
      %v2636 = vmul.f32 %v2493, %v2574
      %v2637 = vmul.f32 %v2495, %v2575
      %v2638 = vmul.f32 %v2497, %v2574
      %v2639 = vmul.f32 %v2499, %v2575
      %v2640 = vpack.c.bf16 %v2578, %v2576
      %v2641 = vpack.c.bf16 %v2579, %v2577
      %v2642 = vpack.c.bf16 %v2582, %v2580
      %v2643 = vpack.c.bf16 %v2583, %v2581
      %v2644 = vpack.c.bf16 %v2586, %v2584
      %v2645 = vpack.c.bf16 %v2587, %v2585
      %v2646 = vpack.c.bf16 %v2590, %v2588
      %v2647 = vpack.c.bf16 %v2591, %v2589
      %v2648 = vpack.c.bf16 %v2594, %v2592
      %v2649 = vpack.c.bf16 %v2595, %v2593
      %v2650 = vpack.c.bf16 %v2598, %v2596
      %v2651 = vpack.c.bf16 %v2599, %v2597
      %v2652 = vpack.c.bf16 %v2602, %v2600
      %v2653 = vpack.c.bf16 %v2603, %v2601
      %v2654 = vpack.c.bf16 %v2606, %v2604
      %v2655 = vpack.c.bf16 %v2607, %v2605
      %v2656 = vpack.c.bf16 %v2610, %v2608
      %v2657 = vpack.c.bf16 %v2611, %v2609
      %v2658 = vpack.c.bf16 %v2614, %v2612
      %v2659 = vpack.c.bf16 %v2615, %v2613
      %v2660 = vpack.c.bf16 %v2618, %v2616
      %v2661 = vpack.c.bf16 %v2619, %v2617
      %v2662 = vpack.c.bf16 %v2622, %v2620
      %v2663 = vpack.c.bf16 %v2623, %v2621
      %v2664 = vpack.c.bf16 %v2626, %v2624
      %v2665 = vpack.c.bf16 %v2627, %v2625
      %v2666 = vpack.c.bf16 %v2630, %v2628
      %v2667 = vpack.c.bf16 %v2631, %v2629
      %v2668 = vpack.c.bf16 %v2634, %v2632
      %v2669 = vpack.c.bf16 %v2635, %v2633
      %v2670 = vpack.c.bf16 %v2638, %v2636
      %v2671 = vpack.c.bf16 %v2639, %v2637
      %2672 = vmatprep.subr.bf16.mxu0 %v2641
      %2673 = vmatpush1.bf16.msra.mxu0 %v2640
      %2674 = vmatprep.subr.bf16.mxu0 %v2643
      %2675 = vmatpush1.bf16.msra.mxu0 %v2642
      %2676 = vmatprep.subr.bf16.mxu0 %v2645
      %2677 = vmatpush1.bf16.msra.mxu0 %v2644
      %2678 = vmatprep.subr.bf16.mxu0 %v2647
      %2679 = vmatpush1.bf16.msra.mxu0 %v2646
      %2680 = vmatprep.subr.bf16.mxu0 %v2649
      %2681 = vmatpush1.bf16.msra.mxu0 %v2648
      %2682 = vmatprep.subr.bf16.mxu0 %v2651
      %2683 = vmatpush1.bf16.msra.mxu0 %v2650
      %2684 = vmatprep.subr.bf16.mxu0 %v2653
      %2685 = vmatpush1.bf16.msra.mxu0 %v2652
      %2686 = vmatprep.subr.bf16.mxu0 %v2655
      %2687 = vmatpush1.bf16.msra.mxu0 %v2654
      %2688 = vmatprep.subr.bf16.mxu0 %v2657
      %2689 = vmatpush1.bf16.msra.mxu0 %v2656
      %2690 = vmatprep.subr.bf16.mxu0 %v2659
      %2691 = vmatpush1.bf16.msra.mxu0 %v2658
      %2692 = vmatprep.subr.bf16.mxu0 %v2661
      %2693 = vmatpush1.bf16.msra.mxu0 %v2660
      %2694 = vmatprep.subr.bf16.mxu0 %v2663
      %2695 = vmatpush1.bf16.msra.mxu0 %v2662
      %2696 = vmatprep.subr.bf16.mxu0 %v2665
      %2697 = vmatpush1.bf16.msra.mxu0 %v2664
      %2698 = vmatprep.subr.bf16.mxu0 %v2667
      %2699 = vmatpush1.bf16.msra.mxu0 %v2666
      %2700 = vmatprep.subr.bf16.mxu0 %v2669
      %2701 = vmatpush1.bf16.msra.mxu0 %v2668
      %2702 = vmatprep.subr.bf16.mxu0 %v2671
      %2703 = vmatpush1.bf16.msra.mxu0 %v2670
      %2704 = vmatprep.mubr.bf16.mxu0 %v1954
      %2705 = vmatmul.mubr.bf16.gmra.mrb[0].mxu0 %v1953
      %v2706 = vpop.f32.mrb[0].mxu0
      %v2707 = vadd.f32 0.0, %v2706
      %v2708 = vpop.f32.mrb[0].mxu0
      %v2709 = vadd.f32 0.0, %v2708
      %v2710 = vpop.f32.mrb[0].mxu0
      %v2711 = vadd.f32 0.0, %v2710
      %v2712 = vpop.f32.mrb[0].mxu0
      %v2713 = vadd.f32 0.0, %v2712
      %2714 = vdwg.mxu0
      %2715 = vmatprep.subr.bf16.mxu0 %v1918
      %2716 = vmatpush1.bf16.msra.mxu0 %v1917
      %2717 = vmatprep.subr.bf16.mxu0 %v1920
      %2718 = vmatpush1.bf16.msra.mxu0 %v1919
      %2719 = vmatprep.subr.bf16.mxu0 %v1922
      %2720 = vmatpush1.bf16.msra.mxu0 %v1921
      %2721 = vmatprep.subr.bf16.mxu0 %v1924
      %2722 = vmatpush1.bf16.msra.mxu0 %v1923
      %2723 = vmatprep.subr.bf16.mxu0 %v1926
      %2724 = vmatpush1.bf16.msra.mxu0 %v1925
      %2725 = vmatprep.subr.bf16.mxu0 %v1928
      %2726 = vmatpush1.bf16.msra.mxu0 %v1927
      %2727 = vmatprep.subr.bf16.mxu0 %v1930
      %2728 = vmatpush1.bf16.msra.mxu0 %v1929
      %2729 = vmatprep.subr.bf16.mxu0 %v1932
      %2730 = vmatpush1.bf16.msra.mxu0 %v1931
      %2731 = vmatprep.subr.bf16.mxu0 %v1934
      %2732 = vmatpush1.bf16.msra.mxu0 %v1933
      %2733 = vmatprep.subr.bf16.mxu0 %v1936
      %2734 = vmatpush1.bf16.msra.mxu0 %v1935
      %2735 = vmatprep.subr.bf16.mxu0 %v1938
      %2736 = vmatpush1.bf16.msra.mxu0 %v1937
      %2737 = vmatprep.subr.bf16.mxu0 %v1940
      %2738 = vmatpush1.bf16.msra.mxu0 %v1939
      %2739 = vmatprep.subr.bf16.mxu0 %v1942
      %2740 = vmatpush1.bf16.msra.mxu0 %v1941
      %2741 = vmatprep.subr.bf16.mxu0 %v1944
      %2742 = vmatpush1.bf16.msra.mxu0 %v1943
      %2743 = vmatprep.subr.bf16.mxu0 %v1946
      %2744 = vmatpush1.bf16.msra.mxu0 %v1945
      %2745 = vmatprep.subr.bf16.mxu0 %v1948
      %2746 = vmatpush1.bf16.msra.mxu0 %v1947
      %2747 = vmatprep.mubr.bf16.mxu0 %v1230
      %2748 = vmatmul.mubr.bf16.gmra.mrb[0].mxu0 %v1229
      %v2749 = vpop.f32.mrb[0].mxu0
      %v2750 = vadd.f32 %v2707, %v2749
      %v2751 = vpop.f32.mrb[0].mxu0
      %v2752 = vadd.f32 %v2709, %v2751
      %v2753 = vpop.f32.mrb[0].mxu0
      %v2754 = vadd.f32 %v2711, %v2753
      %v2755 = vpop.f32.mrb[0].mxu0
      %v2756 = vadd.f32 %v2713, %v2755
      %2757 = vdwg.mxu0
      %v2758 = vld [vmem:[%s9] sm:$0xff]
      %v2759 = vld [vmem:[%s9 + $0x8] sm:$0xff]
      %2761 = vset.pattern.permute.xlu0 0
      %2762 = vperm.xlu0 %2761, %v2758
      %v2763 = vpop.permute.xlu0 %2762
      %2766 = vset.pattern.permute.xlu0 0
      %2767 = vperm.xlu0 %2766, %v2759
      %v2768 = vpop.permute.xlu0 %2767
      %v2770 = vadd.f32 %v2750, %v2763
      %v2771 = vadd.f32 %v2752, %v2763
      %v2772 = vadd.f32 %v2754, %v2768
      %v2773 = vadd.f32 %v2756, %v2768
      %v2774 = vadd.f32 %v2770, %v1058
      %v2775 = vadd.f32 %v2771, %v1059
      %v2776 = vadd.f32 %v2772, %v1060
      %v2777 = vadd.f32 %v2773, %v1061
      %v2778 = vpack.c.bf16 %v2776, %v2774
      %v2779 = vpack.c.bf16 %v2777, %v2775
      %v2782 = vunpack.c.l.b16 %v2778
      %v2783 = vunpack.c.l.b16 %v2779
      %v2784 = vunpack.c.h.b16 %v2778
      %v2785 = vunpack.c.h.b16 %v2779
      %v2786 = vpack.c.b16 %v2783, %v2782
      %v2787 = vpack.c.b16 %v2785, %v2784
      %2790 = vst [vmem:[%s359] sm:$0xff] %v2786
      %2791 = vst [vmem:[%s359 + $0x8] sm:$0xff] %v2787
      %p2792 = scmp.lt.s32.totalorder %s21, 1
      %s2793 = scalar_select %p2792, %s21, 1
      %s2794 = smul.addr %s2793, 4
      %s2795 = smul.addr %s2794, 4
      %s2796 = scalar_lea.vmem %s10, %s2795
      // Predicated region
      $region61: #{res_msa_forward.1} parent=59 // pred_check
        %p2797 = pneg %p254
      $region62: #{res_msa_forward.1} parent=59 // pred_check_branch
        %2799 = sbr.rel (%p2797) target = $region64
      $region63: #{res_msa_forward.1} parent=59 // pred_region
        _
      $region64: #{res_msa_forward.1} parent=59 // pred_fallthru
        _
    $region60: #{res_msa_forward.1} parent=5 // pred_fallthru
      _
    %p2800 = scmp.le.s32.totalorder 2, %s16
    // Predicated region
    $region65: #{res_msa_forward.1} parent=5 // pred_check
      %p2801 = pneg %p2800
    $region66: #{res_msa_forward.1} parent=5 // pred_check_branch
      %2803 = sbr.rel (%p2801) target = $region68
    $region67: #{res_msa_forward.1} parent=5 // pred_region
      %s2804 = ssub.s32 %s16, 2
      // Predicated region
      $region69: #{res_msa_forward.1} parent=67 // pred_check
        %p2805 = pneg %p260
      $region70: #{res_msa_forward.1} parent=67 // pred_check_branch
        %2807 = sbr.rel (%p2805) target = $region72
      $region71: #{res_msa_forward.1} parent=67 // pred_region
        %p2808 = scmp.lt.s32.totalorder %s22, 1
        %s2809 = scalar_select %p2808, %s22, 1
        %s2810 = smul.addr %s2809, 4
        %s2811 = smul.addr %s2810, 4
        %s2812 = scalar_lea.vmem %s10, %s2811
      $region72: #{res_msa_forward.1} parent=67 // pred_fallthru
        _
    $region68: #{res_msa_forward.1} parent=5 // pred_fallthru
      _
  $region6: #{res_msa_forward.1} parent=0 // loop_footer
    %s20 = sadd.s32 1, %s16
  $region7: #{res_msa_forward.1} parent=0 // loop_footer_branch
    %15 = sbr.rel target = $region3
  $region8: #{res_msa_forward.1} parent=0 // loop_exit
    _

</llo_original>
